<compile_context>
chip_gen: v7x
topology: tpu7x:2x2x1
jax: 0.10.0
libtpu: 0.0.40
codegen_flags: <defaults>
</compile_context>

<pallas_src>
import jax
import jax.numpy as jnp
from jax.experimental import pallas as pl
from jax.experimental.pallas import tpu as pltpu

# ---------------- small synthetic config (mirrors cfg.* shapes) ----------------
B = 2              # batch
N_TOK = 64         # number of input tokens (image feats + ray positional encoding)
C = 64             # DIM_IN == TRANSFORMER.DEC_DIM == QUERIES_DIM
Q = 16             # NUM_QUERIES
H = 4              # TRANSFORMER.DEC_HEADS
DH = C // H        # per-head dim
FFN = 128          # TRANSFORMER.DEC_FFN_DIM
NUM_SEMCLS = 8     # NUM_SEMCLS
NCLS = NUM_SEMCLS + 1   # + background class
BQ = B * Q
BN = B * N_TOK

# ---------------- packed output-slab lane layout (lane-dense, 128 wide) ----------------
O_LOGITS = 0            # 9 lanes: classification logits
O_CTR = NCLS            # 3 lanes: center offset
O_SIZE = NCLS + 3       # 3 lanes: size
O_PROB = NCLS + 6       # 9 lanes: sem_cls softmax
OUT_W = 128

# ---------------- packed weight-slab column layout (input dim C for every section) -----
COL_WKV = 0                      # [Wk | Wv] packed over heads     width 2*C = 128
COL_FFN1 = COL_WKV + 2 * C       # FFN first layer                 width FFN = 128
COL_WO = COL_FFN1 + FFN          # attention output projection     width C
COL_CTR2 = COL_WO + C            # center-head hidden layer 2      width C
COL_HEAD = COL_CTR2 + C          # fused heads (see below)         width 128
COL_FFN2 = COL_HEAD + 128        # FFN layer 2, two 64-row halves side by side, width 128
COL_CTR3 = COL_FFN2 + 128        # center offset: ctr_w3 at cols O_CTR..O_CTR+2, width 128
W_SLAB = COL_CTR3 + 128          # 768

# HEAD section column layout (chosen so matmul results land on their output lanes):
#   cols O_LOGITS..+8 : sem_cls weights        -> logits at output lanes 0..8
#   cols O_SIZE..+2   : size weights           -> size   at output lanes 12..14
#   cols O_PROB..+8   : sem_cls weights (copy) -> logits copy at lanes 15..23 (softmax input)
#   cols 64..127      : center-MLP layer-1 weights
HS_CTR1 = 64

# bias / LayerNorm row-table (rows Q.. of the f32 qb slab, each row padded to 128 lanes)
(R_BKV, R_BO, R_LN1G, R_LN1B, R_FFNB1, R_FFNB2, R_LN2G, R_LN2B,
 R_BHEAD, R_CTRG1, R_CTRBE1, R_CTRB2, R_CTRG2, R_CTRBE2, R_CTRB3) = range(15)
B_ROWS = 16


def _ln(x, g, b, eps=1e-5):
    mu = jnp.mean(x, axis=-1, keepdims=True)
    var = jnp.mean((x - mu) ** 2, axis=-1, keepdims=True)
    return (x - mu) * jax.lax.rsqrt(var + eps) * g + b


def parq_decoder_kernel(tok_ref, qb_ref, w_ref, out_ref):
    f32 = jnp.float32
    bf16 = jnp.bfloat16

    def brow(i, width=OUT_W):
        return qb_ref[Q + i:Q + i + 1, 0:width]                         # (1, width) f32

    # ---- fused K|V projection for all heads AND all batch elements: one MXU matmul ----
    kv = jnp.dot(tok_ref[...], w_ref[:, COL_WKV:COL_WKV + 2 * C],
                 preferred_element_type=f32) + brow(R_BKV)              # (B*N, 2C) f32
    k_all = kv[:, 0:C]
    v_all = kv[:, C:2 * C]

    # ---- batch-independent query path (hoisted to the wrapper, loaded here) ----
    q_feat = qb_ref[0:Q, 0:C]                                           # (Q, C) f32
    q_all = qb_ref[0:Q, C:2 * C].astype(bf16)                           # (Q, H*DH), pre-scaled

    # lane index grids used for head-output selection / output assembly
    head_lane = jax.lax.broadcasted_iota(jnp.int32, (Q, C), 1)
    out_lane = jax.lax.broadcasted_iota(jnp.int32, (BQ, OUT_W), 1)

    # ---- attention (B and H unrolled; per-head outputs combined with lane selects) ----
    o_rows = []
    for b in range(B):
        k_b = k_all[b * N_TOK:(b + 1) * N_TOK, :].astype(bf16)          # (N, C)
        v_b = v_all[b * N_TOK:(b + 1) * N_TOK, :].astype(bf16)          # (N, C)
        o_b = None
        for h in range(H):
            qh = q_all[:, h * DH:(h + 1) * DH]                          # (Q, DH)
            kh = k_b[:, h * DH:(h + 1) * DH]                            # (N, DH)
            s = jax.lax.dot_general(qh, kh, (((1,), (1,)), ((), ())),
                                    preferred_element_type=f32)         # (Q, N) f32
            m = jnp.max(s, axis=-1, keepdims=True)
            e = jnp.exp(s - m)
            p = (e * pl.reciprocal(jnp.sum(e, axis=-1, keepdims=True),
                                   approx=True)).astype(bf16)
            # full-width PV: columns h*DH..(h+1)*DH-1 are the true head-h output
            o_h = jnp.dot(p, v_b, preferred_element_type=f32)           # (Q, C) f32
            if o_b is None:
                o_b = o_h
            else:
                keep = (head_lane >= h * DH) & (head_lane < (h + 1) * DH)
                o_b = jnp.where(keep, o_h, o_b)
        o_rows.append(o_b)
    o_all = jnp.concatenate(o_rows, axis=0)                             # (B*Q, C) f32

    # ---- attention output projection + residual + LN (batch rows stacked) ----
    q_feat_s = jnp.concatenate([q_feat] * B, axis=0)                    # (B*Q, C)
    attn = jnp.dot(o_all.astype(bf16), w_ref[:, COL_WO:COL_WO + C],
                   preferred_element_type=f32) + brow(R_BO, C)
    x = _ln(q_feat_s + attn, brow(R_LN1G, C), brow(R_LN1B, C))

    # ---- feed-forward network (layer-2 weight packed as two 64-row halves in the slab) ----
    h1 = jnp.maximum(
        jnp.dot(x.astype(bf16), w_ref[:, COL_FFN1:COL_FFN1 + FFN],
                preferred_element_type=f32) + brow(R_FFNB1), 0.0)       # (B*Q, FFN)
    y = (jnp.dot(h1[:, 0:C].astype(bf16), w_ref[:, COL_FFN2:COL_FFN2 + C],
                 preferred_element_type=f32)
         + jnp.dot(h1[:, C:2 * C].astype(bf16),
                   w_ref[:, COL_FFN2 + C:COL_FFN2 + 2 * C],
                   preferred_element_type=f32)
         + brow(R_FFNB2, C))
    x = _ln(x + y, brow(R_LN2G, C), brow(R_LN2B, C))
    x_bf = x.astype(bf16)

    # ---- fused heads: logits / size land on their output lanes; duplicate logits copy on the
    #      prob lanes; lanes 64..127 carry the center-MLP hidden activations ----
    headA = jnp.dot(x_bf, w_ref[:, COL_HEAD:COL_HEAD + 128],
                    preferred_element_type=f32) + brow(R_BHEAD)         # (B*Q, 128)

    # center-offset MLP on the hidden slice
    c = jnp.maximum(_ln(headA[:, HS_CTR1:HS_CTR1 + C],
                        brow(R_CTRG1, C), brow(R_CTRBE1, C)), 0.0)
    c = jnp.dot(c.astype(bf16), w_ref[:, COL_CTR2:COL_CTR2 + C],
                preferred_element_type=f32) + brow(R_CTRB2, C)
    c = jnp.maximum(_ln(c, brow(R_CTRG2, C), brow(R_CTRBE2, C)), 0.0)
    # fused placement: only columns O_CTR..O_CTR+2 of this weight section are non-zero, so the
    # result already sits on the output lanes (zeros elsewhere)
    ctr_slab = jnp.dot(c.astype(bf16), w_ref[:, COL_CTR3:COL_CTR3 + 128],
                       preferred_element_type=f32) + brow(R_CTRB3)      # (B*Q, 128)

    # exact sem_cls softmax over the duplicated logits at lanes O_PROB..O_PROB+8 (stays in place)
    prob_lanes = (out_lane >= O_PROB) & (out_lane < O_PROB + NCLS)
    masked = jnp.where(prob_lanes, headA, -jnp.inf)
    pm = jnp.max(masked, axis=-1, keepdims=True)
    pe = jnp.exp(masked - pm)
    prob_slab = pe / jnp.sum(pe, axis=-1, keepdims=True)                # zeros off the prob lanes

    # lane-dense output: [logits | center_off | size | prob | zeros]
    out_ref[...] = jnp.where(out_lane < O_PROB, headA, 0.0) + ctr_slab + prob_slab


def pack_params(params, refpoint):
    """Pack the 32 per-op parameters into one bf16 weight slab and one f32 [queries ; bias] slab."""
    (qproj_w, qproj_b, wq, bq, wk, bk, wv, bv, wo, bo,
     ln1_g, ln1_b, ffn_w1, ffn_b1, ffn_w2, ffn_b2, ln2_g, ln2_b,
     sem_w, sem_b, ctr_w1, ctr_b1, ctr_g1, ctr_be1,
     ctr_w2, ctr_b2, ctr_g2, ctr_be2, ctr_w3, ctr_b3, size_w, size_b) = params

    # batch-independent query path, hoisted out of the kernel (f32)
    q_feat = refpoint @ qproj_w + qproj_b                                # (Q, C)
    wq_p = jnp.transpose(wq, (1, 0, 2)).reshape(C, H * DH)
    scale = 1.0 / float(DH) ** 0.5
    q_proj = (q_feat @ wq_p + bq.reshape(1, H * DH)) * scale             # pre-scaled queries
    q_pack = jnp.concatenate([q_feat, q_proj], axis=-1)                  # (Q, 2C) = (16, 128)

    # ---- bf16 weight slab, input dim C for every section ----
    wk_p = jnp.transpose(wk, (1, 0, 2)).reshape(C, H * DH)
    wv_p = jnp.transpose(wv, (1, 0, 2)).reshape(C, H * DH)
    w_kv = jnp.concatenate([wk_p, wv_p], axis=1)                         # (C, 2C)
    wo_p = wo.reshape(H * DH, C)                                         # (C, C)

    head_w = jnp.zeros((C, 128), jnp.float32)
    head_w = head_w.at[:, O_LOGITS:O_LOGITS + NCLS].set(sem_w)
    head_w = head_w.at[:, O_SIZE:O_SIZE + 3].set(size_w)
    head_w = head_w.at[:, O_PROB:O_PROB + NCLS].set(sem_w)               # duplicate for softmax
    head_w = head_w.at[:, HS_CTR1:HS_CTR1 + C].set(ctr_w1)

    ffn2_pk = jnp.concatenate([ffn_w2[0:C, :], ffn_w2[C:2 * C, :]], axis=1)   # (C, 2C)
    ctr3_w = jnp.zeros((C, 128), jnp.float32).at[:, O_CTR:O_CTR + 3].set(ctr_w3)

    w_slab = jnp.concatenate([w_kv, ffn_w1, wo_p, ctr_w2, head_w, ffn2_pk, ctr3_w],
                             axis=1).astype(jnp.bfloat16)                # (C, W_SLAB) = (64, 768)

    # ---- f32 [q_pack ; bias / LN row-table] slab ----
    def row(*vecs):
        v = jnp.concatenate([jnp.reshape(x, (-1,)) for x in vecs])
        return jnp.pad(v, (0, 128 - v.shape[0]))

    bhead = jnp.zeros((128,), jnp.float32)
    bhead = bhead.at[O_LOGITS:O_LOGITS + NCLS].set(sem_b.reshape(-1))
    bhead = bhead.at[O_SIZE:O_SIZE + 3].set(size_b.reshape(-1))
    bhead = bhead.at[O_PROB:O_PROB + NCLS].set(sem_b.reshape(-1))
    bhead = bhead.at[HS_CTR1:HS_CTR1 + C].set(ctr_b1.reshape(-1))
    bctr3 = jnp.zeros((128,), jnp.float32).at[O_CTR:O_CTR + 3].set(ctr_b3.reshape(-1))

    b_rows = [
        row(bk, bv),                    # R_BKV
        row(bo),                        # R_BO
        row(ln1_g), row(ln1_b),         # R_LN1G, R_LN1B
        row(ffn_b1), row(ffn_b2),       # R_FFNB1, R_FFNB2
        row(ln2_g), row(ln2_b),         # R_LN2G, R_LN2B
        bhead,                          # R_BHEAD
        row(ctr_g1), row(ctr_be1),      # R_CTRG1, R_CTRBE1
        row(ctr_b2),                    # R_CTRB2
        row(ctr_g2), row(ctr_be2),      # R_CTRG2, R_CTRBE2
        bctr3,                          # R_CTRB3
        jnp.zeros((128,), jnp.float32),
    ]
    qb_slab = jnp.concatenate([q_pack, jnp.stack(b_rows, axis=0)], axis=0)    # (Q+16, 128) f32
    return qb_slab, w_slab


def parq_decoder_forward(tokens, refpoint, params):
    """tokens: (B, N_TOK, C) f32, refpoint: (Q, 3) f32 (== nn.Embedding(Q, 3).weight)."""
    qb_slab, w_slab = pack_params(params, refpoint)
    tok_flat = tokens.reshape(BN, C).astype(jnp.bfloat16)     # batch folded into the M dim

    out = pl.pallas_call(
        parq_decoder_kernel,
        out_shape=jax.ShapeDtypeStruct((BQ, OUT_W), jnp.float32),
        in_specs=[pl.BlockSpec(memory_space=pltpu.MemorySpace.VMEM)] * 3,
        out_specs=pl.BlockSpec(memory_space=pltpu.MemorySpace.VMEM),
    )(tok_flat, qb_slab, w_slab)

    out = out.reshape(B, Q, OUT_W)
    logits = out[:, :, O_LOGITS:O_LOGITS + NCLS]
    # TODO(synk): BoxProcessor (mean-size anchors / normalized-center decoding) source is not
    # available; decode as refpoint + raw offset and raw size head output.
    center = refpoint[None, :, :] + out[:, :, O_CTR:O_CTR + 3]
    size = out[:, :, O_SIZE:O_SIZE + 3]
    prob = out[:, :, O_PROB:O_PROB + NCLS]

    # dec_layers == 1 -> box_prediction_list has a single iteration dict
    return [{
        "pred_logits": logits,
        "center_unnormalized": center,
        "size_unnormalized": size,
        "sem_cls_prob": prob,
    }]


# ---------------- deterministic parameter init ----------------
def init_params(key):
    ks = list(jax.random.split(key, 16))
    it = iter(ks)

    def w(shape, scale=0.05):
        return (scale * jax.random.normal(next(it), shape)).astype(jnp.float32)

    zeros = lambda shape: jnp.zeros(shape, jnp.float32)
    ones = lambda shape: jnp.ones(shape, jnp.float32)

    params = [
        w((3, C)), zeros((1, C)),                 # qproj_w, qproj_b  (refpoint -> query feat)
        w((H, C, DH)), zeros((H, DH)),            # wq, bq
        w((H, C, DH)), zeros((H, DH)),            # wk, bk
        w((H, C, DH)), zeros((H, DH)),            # wv, bv
        w((H, DH, C)), zeros((1, C)),             # wo, bo
        ones((1, C)), zeros((1, C)),              # ln1 gamma/beta
        w((C, FFN)), zeros((1, FFN)),             # ffn_w1, ffn_b1
        w((FFN, C)), zeros((1, C)),               # ffn_w2, ffn_b2
        ones((1, C)), zeros((1, C)),              # ln2 gamma/beta
        w((C, NCLS)), zeros((1, NCLS)),           # sem_cls head
        w((C, C)), zeros((1, C)), ones((1, C)), zeros((1, C)),   # center head layer 1 + ln
        w((C, C)), zeros((1, C)), ones((1, C)), zeros((1, C)),   # center head layer 2 + ln
        w((C, 3)), zeros((1, 3)),                 # center head output
        w((C, 3)), zeros((1, 3)),                 # size head
    ]
    return params


# ---------------- pure-JAX reference (numerical sanity check) ----------------
def reference_forward(tokens, refpoint, params):
    (qproj_w, qproj_b, wq, bq, wk, bk, wv, bv, wo, bo,
     ln1_g, ln1_b, ffn_w1, ffn_b1, ffn_w2, ffn_b2, ln2_g, ln2_b,
     sem_w, sem_b, ctr_w1, ctr_b1, ctr_g1, ctr_be1,
     ctr_w2, ctr_b2, ctr_g2, ctr_be2, ctr_w3, ctr_b3, size_w, size_b) = params

    def one(tok):
        q_feat = refpoint @ qproj_w + qproj_b
        scale = 1.0 / jnp.sqrt(jnp.float32(DH))
        attn = jnp.zeros((Q, C), jnp.float32)
        for h in range(H):
            qh = q_feat @ wq[h] + bq[h]
            kh = tok @ wk[h] + bk[h]
            vh = tok @ wv[h] + bv[h]
            p = jax.nn.softmax((qh @ kh.T) * scale, axis=-1)
            attn = attn + (p @ vh) @ wo[h]
        attn = attn + bo
        x = _ln(q_feat + attn, ln1_g, ln1_b)
        h1 = jnp.maximum(x @ ffn_w1 + ffn_b1, 0.0)
        x = _ln(x + h1 @ ffn_w2 + ffn_b2, ln2_g, ln2_b)
        logits = x @ sem_w + sem_b
        c = jnp.maximum(_ln(x @ ctr_w1 + ctr_b1, ctr_g1, ctr_be1), 0.0)
        c = jnp.maximum(_ln(c @ ctr_w2 + ctr_b2, ctr_g2, ctr_be2), 0.0)
        center = refpoint + (c @ ctr_w3 + ctr_b3)
        size = x @ size_w + size_b
        return logits, center, size, jax.nn.softmax(logits, axis=-1)

    outs = [one(tokens[b]) for b in range(B)]
    stack = lambda i: jnp.stack([o[i] for o in outs], axis=0)
    return stack(0), stack(1), stack(2), stack(3)


if __name__ == "__main__":
    key = jax.random.PRNGKey(0)
    k_tok, k_ref, k_par = jax.random.split(key, 3)

    tokens = jax.random.normal(k_tok, (B, N_TOK, C), dtype=jnp.float32)      # (B, N, C)
    refpoint = jax.random.normal(k_ref, (Q, 3), dtype=jnp.float32)           # (Q, 3)
    params = init_params(k_par)

    box_prediction_list = parq_decoder_forward(tokens, refpoint, params)
    out = box_prediction_list[-1]
    jax.block_until_ready(out["sem_cls_prob"])

    # numerical sanity check against a plain-JAX f32 reference.  Tolerance accounts for the bf16
    # MXU operands and the approximate EUP reciprocal used in the attention softmax.
    ref_logits, ref_center, ref_size, ref_prob = reference_forward(tokens, refpoint, params)
    tol = dict(atol=3e-2, rtol=3e-2)
    assert jnp.allclose(out["pred_logits"], ref_logits, **tol)
    assert jnp.allclose(out["center_unnormalized"], ref_center, **tol)
    assert jnp.allclose(out["size_unnormalized"], ref_size, **tol)
    assert jnp.allclose(out["sem_cls_prob"], ref_prob, **tol)

    assert out["pred_logits"].shape == (B, Q, NCLS)
    assert out["center_unnormalized"].shape == (B, Q, 3)
    assert out["size_unnormalized"].shape == (B, Q, 3)
    assert out["sem_cls_prob"].shape == (B, Q, NCLS)

    print("KERNEL_OK")
</pallas_src>

<mosaic_0001>
module attributes {stable_mosaic.version = 11 : i64} {
  func.func @parq_decoder_kernel(%arg0: memref<128x64xbf16, #tpu.memory_space<vmem>>, %arg1: memref<32x128xf32, #tpu.memory_space<vmem>>, %arg2: memref<64x768xbf16, #tpu.memory_space<vmem>>, %arg3: memref<32x128xf32, #tpu.memory_space<vmem>>) attributes {dimension_semantics = [], scalar_prefetch = 0 : i64, scratch_operands = 0 : i64, tpu.core_type = #tpu.core_type<tc>} {
    %c0 = arith.constant 0 : index
    %c0_0 = arith.constant 0 : index
    %0 = vector.load %arg0[%c0, %c0_0] : memref<128x64xbf16, #tpu.memory_space<vmem>>, vector<128x64xbf16>
    %c0_1 = arith.constant 0 : index
    %c0_2 = arith.constant 0 : index
    %1 = vector.load %arg2[%c0_1, %c0_2] : memref<64x768xbf16, #tpu.memory_space<vmem>>, vector<64x128xbf16>
    %cst = arith.constant dense<0.000000e+00> : vector<128x128xf32>
    %2 = tpu.matmul %0, %1, %cst {dimension_numbers = #tpu.dot_dimension_numbers<[1], [0], [0], [1], [0, 0, 1, 1], [], []>} : vector<128x64xbf16>, vector<64x128xbf16>, vector<128x128xf32> -> vector<128x128xf32>
    %c16 = arith.constant 16 : index
    %c0_3 = arith.constant 0 : index
    %3 = vector.load %arg1[%c16, %c0_3] : memref<32x128xf32, #tpu.memory_space<vmem>>, vector<1x128xf32>
    %4 = vector.broadcast %3 : vector<1x128xf32> to vector<128x128xf32>
    %5 = arith.addf %2, %4 : vector<128x128xf32>
    %6 = vector.extract_strided_slice %5 {offsets = [0, 0], sizes = [128, 64], strides = [1, 1]} : vector<128x128xf32> to vector<128x64xf32>
    %7 = vector.extract_strided_slice %5 {offsets = [0, 64], sizes = [128, 64], strides = [1, 1]} : vector<128x128xf32> to vector<128x64xf32>
    %c0_4 = arith.constant 0 : index
    %c0_5 = arith.constant 0 : index
    %8 = vector.load %arg1[%c0_4, %c0_5] : memref<32x128xf32, #tpu.memory_space<vmem>>, vector<16x64xf32>
    %c0_6 = arith.constant 0 : index
    %c64 = arith.constant 64 : index
    %9 = vector.load %arg1[%c0_6, %c64] : memref<32x128xf32, #tpu.memory_space<vmem>>, vector<16x64xf32>
    %10 = arith.truncf %9 : vector<16x64xf32> to vector<16x64xbf16>
    %11 = tpu.iota {dimensions = array<i32: 1>} : vector<16x64xi32>
    %12 = tpu.iota {dimensions = array<i32: 1>} : vector<32x128xi32>
    %13 = vector.extract_strided_slice %6 {offsets = [0, 0], sizes = [64, 64], strides = [1, 1]} : vector<128x64xf32> to vector<64x64xf32>
    %14 = arith.truncf %13 : vector<64x64xf32> to vector<64x64xbf16>
    %15 = vector.extract_strided_slice %7 {offsets = [0, 0], sizes = [64, 64], strides = [1, 1]} : vector<128x64xf32> to vector<64x64xf32>
    %16 = arith.truncf %15 : vector<64x64xf32> to vector<64x64xbf16>
    %17 = vector.extract_strided_slice %10 {offsets = [0, 0], sizes = [16, 16], strides = [1, 1]} : vector<16x64xbf16> to vector<16x16xbf16>
    %18 = vector.extract_strided_slice %14 {offsets = [0, 0], sizes = [64, 16], strides = [1, 1]} : vector<64x64xbf16> to vector<64x16xbf16>
    %cst_7 = arith.constant dense<0.000000e+00> : vector<16x64xf32>
    %19 = tpu.matmul %17, %18, %cst_7 {dimension_numbers = #tpu.dot_dimension_numbers<[1], [1], [0], [0], [0, 0, 1, 0], [], []>} : vector<16x16xbf16>, vector<64x16xbf16>, vector<16x64xf32> -> vector<16x64xf32>
    %cst_8 = arith.constant dense<0xFF800000> : vector<16xf32>
    %20 = vector.multi_reduction <maximumf>, %19, %cst_8 [1] : vector<16x64xf32> to vector<16xf32>
    %21 = vector.shape_cast %20 : vector<16xf32> to vector<16x1xf32>
    %22 = vector.broadcast %21 : vector<16x1xf32> to vector<16x64xf32>
    %23 = arith.subf %19, %22 : vector<16x64xf32>
    %24 = math.exp %23 : vector<16x64xf32>
    %cst_9 = arith.constant dense<0.000000e+00> : vector<16xf32>
    %25 = vector.multi_reduction <add>, %24, %cst_9 [1] : vector<16x64xf32> to vector<16xf32>
    %26 = vector.shape_cast %25 : vector<16xf32> to vector<16x1xf32>
    %27 = tpu.reciprocal %26 {approx = true} : vector<16x1xf32> -> vector<16x1xf32>
    %28 = vector.broadcast %27 : vector<16x1xf32> to vector<16x64xf32>
    %29 = arith.mulf %24, %28 : vector<16x64xf32>
    %30 = arith.truncf %29 : vector<16x64xf32> to vector<16x64xbf16>
    %cst_10 = arith.constant dense<0.000000e+00> : vector<16x64xf32>
    %31 = tpu.matmul %30, %16, %cst_10 {dimension_numbers = #tpu.dot_dimension_numbers<[1], [0], [0], [1], [0, 0, 1, 1], [], []>} : vector<16x64xbf16>, vector<64x64xbf16>, vector<16x64xf32> -> vector<16x64xf32>
    %32 = vector.extract_strided_slice %10 {offsets = [0, 16], sizes = [16, 16], strides = [1, 1]} : vector<16x64xbf16> to vector<16x16xbf16>
    %33 = vector.extract_strided_slice %14 {offsets = [0, 16], sizes = [64, 16], strides = [1, 1]} : vector<64x64xbf16> to vector<64x16xbf16>
    %cst_11 = arith.constant dense<0.000000e+00> : vector<16x64xf32>
    %34 = tpu.matmul %32, %33, %cst_11 {dimension_numbers = #tpu.dot_dimension_numbers<[1], [1], [0], [0], [0, 0, 1, 0], [], []>} : vector<16x16xbf16>, vector<64x16xbf16>, vector<16x64xf32> -> vector<16x64xf32>
    %cst_12 = arith.constant dense<0xFF800000> : vector<16xf32>
    %35 = vector.multi_reduction <maximumf>, %34, %cst_12 [1] : vector<16x64xf32> to vector<16xf32>
    %36 = vector.shape_cast %35 : vector<16xf32> to vector<16x1xf32>
    %37 = vector.broadcast %36 : vector<16x1xf32> to vector<16x64xf32>
    %38 = arith.subf %34, %37 : vector<16x64xf32>
    %39 = math.exp %38 : vector<16x64xf32>
    %cst_13 = arith.constant dense<0.000000e+00> : vector<16xf32>
    %40 = vector.multi_reduction <add>, %39, %cst_13 [1] : vector<16x64xf32> to vector<16xf32>
    %41 = vector.shape_cast %40 : vector<16xf32> to vector<16x1xf32>
    %42 = tpu.reciprocal %41 {approx = true} : vector<16x1xf32> -> vector<16x1xf32>
    %43 = vector.broadcast %42 : vector<16x1xf32> to vector<16x64xf32>
    %44 = arith.mulf %39, %43 : vector<16x64xf32>
    %45 = arith.truncf %44 : vector<16x64xf32> to vector<16x64xbf16>
    %cst_14 = arith.constant dense<0.000000e+00> : vector<16x64xf32>
    %46 = tpu.matmul %45, %16, %cst_14 {dimension_numbers = #tpu.dot_dimension_numbers<[1], [0], [0], [1], [0, 0, 1, 1], [], []>} : vector<16x64xbf16>, vector<64x64xbf16>, vector<16x64xf32> -> vector<16x64xf32>
    %c16_i32 = arith.constant 16 : i32
    %47 = vector.broadcast %c16_i32 : i32 to vector<16x64xi32>
    %48 = arith.cmpi sge, %11, %47 : vector<16x64xi32>
    %c32_i32 = arith.constant 32 : i32
    %49 = vector.broadcast %c32_i32 : i32 to vector<16x64xi32>
    %50 = arith.cmpi slt, %11, %49 : vector<16x64xi32>
    %51 = arith.andi %48, %50 : vector<16x64xi1>
    %52 = arith.select %51, %46, %31 : vector<16x64xi1>, vector<16x64xf32>
    %53 = vector.extract_strided_slice %10 {offsets = [0, 32], sizes = [16, 16], strides = [1, 1]} : vector<16x64xbf16> to vector<16x16xbf16>
    %54 = vector.extract_strided_slice %14 {offsets = [0, 32], sizes = [64, 16], strides = [1, 1]} : vector<64x64xbf16> to vector<64x16xbf16>
    %cst_15 = arith.constant dense<0.000000e+00> : vector<16x64xf32>
    %55 = tpu.matmul %53, %54, %cst_15 {dimension_numbers = #tpu.dot_dimension_numbers<[1], [1], [0], [0], [0, 0, 1, 0], [], []>} : vector<16x16xbf16>, vector<64x16xbf16>, vector<16x64xf32> -> vector<16x64xf32>
    %cst_16 = arith.constant dense<0xFF800000> : vector<16xf32>
    %56 = vector.multi_reduction <maximumf>, %55, %cst_16 [1] : vector<16x64xf32> to vector<16xf32>
    %57 = vector.shape_cast %56 : vector<16xf32> to vector<16x1xf32>
    %58 = vector.broadcast %57 : vector<16x1xf32> to vector<16x64xf32>
    %59 = arith.subf %55, %58 : vector<16x64xf32>
    %60 = math.exp %59 : vector<16x64xf32>
    %cst_17 = arith.constant dense<0.000000e+00> : vector<16xf32>
    %61 = vector.multi_reduction <add>, %60, %cst_17 [1] : vector<16x64xf32> to vector<16xf32>
    %62 = vector.shape_cast %61 : vector<16xf32> to vector<16x1xf32>
    %63 = tpu.reciprocal %62 {approx = true} : vector<16x1xf32> -> vector<16x1xf32>
    %64 = vector.broadcast %63 : vector<16x1xf32> to vector<16x64xf32>
    %65 = arith.mulf %60, %64 : vector<16x64xf32>
    %66 = arith.truncf %65 : vector<16x64xf32> to vector<16x64xbf16>
    %cst_18 = arith.constant dense<0.000000e+00> : vector<16x64xf32>
    %67 = tpu.matmul %66, %16, %cst_18 {dimension_numbers = #tpu.dot_dimension_numbers<[1], [0], [0], [1], [0, 0, 1, 1], [], []>} : vector<16x64xbf16>, vector<64x64xbf16>, vector<16x64xf32> -> vector<16x64xf32>
    %c32_i32_19 = arith.constant 32 : i32
    %68 = vector.broadcast %c32_i32_19 : i32 to vector<16x64xi32>
    %69 = arith.cmpi sge, %11, %68 : vector<16x64xi32>
    %c48_i32 = arith.constant 48 : i32
    %70 = vector.broadcast %c48_i32 : i32 to vector<16x64xi32>
    %71 = arith.cmpi slt, %11, %70 : vector<16x64xi32>
    %72 = arith.andi %69, %71 : vector<16x64xi1>
    %73 = arith.select %72, %67, %52 : vector<16x64xi1>, vector<16x64xf32>
    %74 = vector.extract_strided_slice %10 {offsets = [0, 48], sizes = [16, 16], strides = [1, 1]} : vector<16x64xbf16> to vector<16x16xbf16>
    %75 = vector.extract_strided_slice %14 {offsets = [0, 48], sizes = [64, 16], strides = [1, 1]} : vector<64x64xbf16> to vector<64x16xbf16>
    %cst_20 = arith.constant dense<0.000000e+00> : vector<16x64xf32>
    %76 = tpu.matmul %74, %75, %cst_20 {dimension_numbers = #tpu.dot_dimension_numbers<[1], [1], [0], [0], [0, 0, 1, 0], [], []>} : vector<16x16xbf16>, vector<64x16xbf16>, vector<16x64xf32> -> vector<16x64xf32>
    %cst_21 = arith.constant dense<0xFF800000> : vector<16xf32>
    %77 = vector.multi_reduction <maximumf>, %76, %cst_21 [1] : vector<16x64xf32> to vector<16xf32>
    %78 = vector.shape_cast %77 : vector<16xf32> to vector<16x1xf32>
    %79 = vector.broadcast %78 : vector<16x1xf32> to vector<16x64xf32>
    %80 = arith.subf %76, %79 : vector<16x64xf32>
    %81 = math.exp %80 : vector<16x64xf32>
    %cst_22 = arith.constant dense<0.000000e+00> : vector<16xf32>
    %82 = vector.multi_reduction <add>, %81, %cst_22 [1] : vector<16x64xf32> to vector<16xf32>
    %83 = vector.shape_cast %82 : vector<16xf32> to vector<16x1xf32>
    %84 = tpu.reciprocal %83 {approx = true} : vector<16x1xf32> -> vector<16x1xf32>
    %85 = vector.broadcast %84 : vector<16x1xf32> to vector<16x64xf32>
    %86 = arith.mulf %81, %85 : vector<16x64xf32>
    %87 = arith.truncf %86 : vector<16x64xf32> to vector<16x64xbf16>
    %cst_23 = arith.constant dense<0.000000e+00> : vector<16x64xf32>
    %88 = tpu.matmul %87, %16, %cst_23 {dimension_numbers = #tpu.dot_dimension_numbers<[1], [0], [0], [1], [0, 0, 1, 1], [], []>} : vector<16x64xbf16>, vector<64x64xbf16>, vector<16x64xf32> -> vector<16x64xf32>
    %c48_i32_24 = arith.constant 48 : i32
    %89 = vector.broadcast %c48_i32_24 : i32 to vector<16x64xi32>
    %90 = arith.cmpi sge, %11, %89 : vector<16x64xi32>
    %c64_i32 = arith.constant 64 : i32
    %91 = vector.broadcast %c64_i32 : i32 to vector<16x64xi32>
    %92 = arith.cmpi slt, %11, %91 : vector<16x64xi32>
    %93 = arith.andi %90, %92 : vector<16x64xi1>
    %94 = arith.select %93, %88, %73 : vector<16x64xi1>, vector<16x64xf32>
    %95 = vector.extract_strided_slice %6 {offsets = [64, 0], sizes = [64, 64], strides = [1, 1]} : vector<128x64xf32> to vector<64x64xf32>
    %96 = arith.truncf %95 : vector<64x64xf32> to vector<64x64xbf16>
    %97 = vector.extract_strided_slice %7 {offsets = [64, 0], sizes = [64, 64], strides = [1, 1]} : vector<128x64xf32> to vector<64x64xf32>
    %98 = arith.truncf %97 : vector<64x64xf32> to vector<64x64xbf16>
    %99 = vector.extract_strided_slice %10 {offsets = [0, 0], sizes = [16, 16], strides = [1, 1]} : vector<16x64xbf16> to vector<16x16xbf16>
    %100 = vector.extract_strided_slice %96 {offsets = [0, 0], sizes = [64, 16], strides = [1, 1]} : vector<64x64xbf16> to vector<64x16xbf16>
    %cst_25 = arith.constant dense<0.000000e+00> : vector<16x64xf32>
    %101 = tpu.matmul %99, %100, %cst_25 {dimension_numbers = #tpu.dot_dimension_numbers<[1], [1], [0], [0], [0, 0, 1, 0], [], []>} : vector<16x16xbf16>, vector<64x16xbf16>, vector<16x64xf32> -> vector<16x64xf32>
    %cst_26 = arith.constant dense<0xFF800000> : vector<16xf32>
    %102 = vector.multi_reduction <maximumf>, %101, %cst_26 [1] : vector<16x64xf32> to vector<16xf32>
    %103 = vector.shape_cast %102 : vector<16xf32> to vector<16x1xf32>
    %104 = vector.broadcast %103 : vector<16x1xf32> to vector<16x64xf32>
    %105 = arith.subf %101, %104 : vector<16x64xf32>
    %106 = math.exp %105 : vector<16x64xf32>
    %cst_27 = arith.constant dense<0.000000e+00> : vector<16xf32>
    %107 = vector.multi_reduction <add>, %106, %cst_27 [1] : vector<16x64xf32> to vector<16xf32>
    %108 = vector.shape_cast %107 : vector<16xf32> to vector<16x1xf32>
    %109 = tpu.reciprocal %108 {approx = true} : vector<16x1xf32> -> vector<16x1xf32>
    %110 = vector.broadcast %109 : vector<16x1xf32> to vector<16x64xf32>
    %111 = arith.mulf %106, %110 : vector<16x64xf32>
    %112 = arith.truncf %111 : vector<16x64xf32> to vector<16x64xbf16>
    %cst_28 = arith.constant dense<0.000000e+00> : vector<16x64xf32>
    %113 = tpu.matmul %112, %98, %cst_28 {dimension_numbers = #tpu.dot_dimension_numbers<[1], [0], [0], [1], [0, 0, 1, 1], [], []>} : vector<16x64xbf16>, vector<64x64xbf16>, vector<16x64xf32> -> vector<16x64xf32>
    %114 = vector.extract_strided_slice %10 {offsets = [0, 16], sizes = [16, 16], strides = [1, 1]} : vector<16x64xbf16> to vector<16x16xbf16>
    %115 = vector.extract_strided_slice %96 {offsets = [0, 16], sizes = [64, 16], strides = [1, 1]} : vector<64x64xbf16> to vector<64x16xbf16>
    %cst_29 = arith.constant dense<0.000000e+00> : vector<16x64xf32>
    %116 = tpu.matmul %114, %115, %cst_29 {dimension_numbers = #tpu.dot_dimension_numbers<[1], [1], [0], [0], [0, 0, 1, 0], [], []>} : vector<16x16xbf16>, vector<64x16xbf16>, vector<16x64xf32> -> vector<16x64xf32>
    %cst_30 = arith.constant dense<0xFF800000> : vector<16xf32>
    %117 = vector.multi_reduction <maximumf>, %116, %cst_30 [1] : vector<16x64xf32> to vector<16xf32>
    %118 = vector.shape_cast %117 : vector<16xf32> to vector<16x1xf32>
    %119 = vector.broadcast %118 : vector<16x1xf32> to vector<16x64xf32>
    %120 = arith.subf %116, %119 : vector<16x64xf32>
    %121 = math.exp %120 : vector<16x64xf32>
    %cst_31 = arith.constant dense<0.000000e+00> : vector<16xf32>
    %122 = vector.multi_reduction <add>, %121, %cst_31 [1] : vector<16x64xf32> to vector<16xf32>
    %123 = vector.shape_cast %122 : vector<16xf32> to vector<16x1xf32>
    %124 = tpu.reciprocal %123 {approx = true} : vector<16x1xf32> -> vector<16x1xf32>
    %125 = vector.broadcast %124 : vector<16x1xf32> to vector<16x64xf32>
    %126 = arith.mulf %121, %125 : vector<16x64xf32>
    %127 = arith.truncf %126 : vector<16x64xf32> to vector<16x64xbf16>
    %cst_32 = arith.constant dense<0.000000e+00> : vector<16x64xf32>
    %128 = tpu.matmul %127, %98, %cst_32 {dimension_numbers = #tpu.dot_dimension_numbers<[1], [0], [0], [1], [0, 0, 1, 1], [], []>} : vector<16x64xbf16>, vector<64x64xbf16>, vector<16x64xf32> -> vector<16x64xf32>
    %c16_i32_33 = arith.constant 16 : i32
    %129 = vector.broadcast %c16_i32_33 : i32 to vector<16x64xi32>
    %130 = arith.cmpi sge, %11, %129 : vector<16x64xi32>
    %c32_i32_34 = arith.constant 32 : i32
    %131 = vector.broadcast %c32_i32_34 : i32 to vector<16x64xi32>
    %132 = arith.cmpi slt, %11, %131 : vector<16x64xi32>
    %133 = arith.andi %130, %132 : vector<16x64xi1>
    %134 = arith.select %133, %128, %113 : vector<16x64xi1>, vector<16x64xf32>
    %135 = vector.extract_strided_slice %10 {offsets = [0, 32], sizes = [16, 16], strides = [1, 1]} : vector<16x64xbf16> to vector<16x16xbf16>
    %136 = vector.extract_strided_slice %96 {offsets = [0, 32], sizes = [64, 16], strides = [1, 1]} : vector<64x64xbf16> to vector<64x16xbf16>
    %cst_35 = arith.constant dense<0.000000e+00> : vector<16x64xf32>
    %137 = tpu.matmul %135, %136, %cst_35 {dimension_numbers = #tpu.dot_dimension_numbers<[1], [1], [0], [0], [0, 0, 1, 0], [], []>} : vector<16x16xbf16>, vector<64x16xbf16>, vector<16x64xf32> -> vector<16x64xf32>
    %cst_36 = arith.constant dense<0xFF800000> : vector<16xf32>
    %138 = vector.multi_reduction <maximumf>, %137, %cst_36 [1] : vector<16x64xf32> to vector<16xf32>
    %139 = vector.shape_cast %138 : vector<16xf32> to vector<16x1xf32>
    %140 = vector.broadcast %139 : vector<16x1xf32> to vector<16x64xf32>
    %141 = arith.subf %137, %140 : vector<16x64xf32>
    %142 = math.exp %141 : vector<16x64xf32>
    %cst_37 = arith.constant dense<0.000000e+00> : vector<16xf32>
    %143 = vector.multi_reduction <add>, %142, %cst_37 [1] : vector<16x64xf32> to vector<16xf32>
    %144 = vector.shape_cast %143 : vector<16xf32> to vector<16x1xf32>
    %145 = tpu.reciprocal %144 {approx = true} : vector<16x1xf32> -> vector<16x1xf32>
    %146 = vector.broadcast %145 : vector<16x1xf32> to vector<16x64xf32>
    %147 = arith.mulf %142, %146 : vector<16x64xf32>
    %148 = arith.truncf %147 : vector<16x64xf32> to vector<16x64xbf16>
    %cst_38 = arith.constant dense<0.000000e+00> : vector<16x64xf32>
    %149 = tpu.matmul %148, %98, %cst_38 {dimension_numbers = #tpu.dot_dimension_numbers<[1], [0], [0], [1], [0, 0, 1, 1], [], []>} : vector<16x64xbf16>, vector<64x64xbf16>, vector<16x64xf32> -> vector<16x64xf32>
    %c32_i32_39 = arith.constant 32 : i32
    %150 = vector.broadcast %c32_i32_39 : i32 to vector<16x64xi32>
    %151 = arith.cmpi sge, %11, %150 : vector<16x64xi32>
    %c48_i32_40 = arith.constant 48 : i32
    %152 = vector.broadcast %c48_i32_40 : i32 to vector<16x64xi32>
    %153 = arith.cmpi slt, %11, %152 : vector<16x64xi32>
    %154 = arith.andi %151, %153 : vector<16x64xi1>
    %155 = arith.select %154, %149, %134 : vector<16x64xi1>, vector<16x64xf32>
    %156 = vector.extract_strided_slice %10 {offsets = [0, 48], sizes = [16, 16], strides = [1, 1]} : vector<16x64xbf16> to vector<16x16xbf16>
    %157 = vector.extract_strided_slice %96 {offsets = [0, 48], sizes = [64, 16], strides = [1, 1]} : vector<64x64xbf16> to vector<64x16xbf16>
    %cst_41 = arith.constant dense<0.000000e+00> : vector<16x64xf32>
    %158 = tpu.matmul %156, %157, %cst_41 {dimension_numbers = #tpu.dot_dimension_numbers<[1], [1], [0], [0], [0, 0, 1, 0], [], []>} : vector<16x16xbf16>, vector<64x16xbf16>, vector<16x64xf32> -> vector<16x64xf32>
    %cst_42 = arith.constant dense<0xFF800000> : vector<16xf32>
    %159 = vector.multi_reduction <maximumf>, %158, %cst_42 [1] : vector<16x64xf32> to vector<16xf32>
    %160 = vector.shape_cast %159 : vector<16xf32> to vector<16x1xf32>
    %161 = vector.broadcast %160 : vector<16x1xf32> to vector<16x64xf32>
    %162 = arith.subf %158, %161 : vector<16x64xf32>
    %163 = math.exp %162 : vector<16x64xf32>
    %cst_43 = arith.constant dense<0.000000e+00> : vector<16xf32>
    %164 = vector.multi_reduction <add>, %163, %cst_43 [1] : vector<16x64xf32> to vector<16xf32>
    %165 = vector.shape_cast %164 : vector<16xf32> to vector<16x1xf32>
    %166 = tpu.reciprocal %165 {approx = true} : vector<16x1xf32> -> vector<16x1xf32>
    %167 = vector.broadcast %166 : vector<16x1xf32> to vector<16x64xf32>
    %168 = arith.mulf %163, %167 : vector<16x64xf32>
    %169 = arith.truncf %168 : vector<16x64xf32> to vector<16x64xbf16>
    %cst_44 = arith.constant dense<0.000000e+00> : vector<16x64xf32>
    %170 = tpu.matmul %169, %98, %cst_44 {dimension_numbers = #tpu.dot_dimension_numbers<[1], [0], [0], [1], [0, 0, 1, 1], [], []>} : vector<16x64xbf16>, vector<64x64xbf16>, vector<16x64xf32> -> vector<16x64xf32>
    %c48_i32_45 = arith.constant 48 : i32
    %171 = vector.broadcast %c48_i32_45 : i32 to vector<16x64xi32>
    %172 = arith.cmpi sge, %11, %171 : vector<16x64xi32>
    %c64_i32_46 = arith.constant 64 : i32
    %173 = vector.broadcast %c64_i32_46 : i32 to vector<16x64xi32>
    %174 = arith.cmpi slt, %11, %173 : vector<16x64xi32>
    %175 = arith.andi %172, %174 : vector<16x64xi1>
    %176 = arith.select %175, %170, %155 : vector<16x64xi1>, vector<16x64xf32>
    %177 = tpu.concatenate %94, %176 in 0 : vector<16x64xf32>, vector<16x64xf32> -> vector<32x64xf32>
    %178 = tpu.concatenate %8, %8 in 0 : vector<16x64xf32>, vector<16x64xf32> -> vector<32x64xf32>
    %179 = arith.truncf %177 : vector<32x64xf32> to vector<32x64xbf16>
    %c0_47 = arith.constant 0 : index
    %c256 = arith.constant 256 : index
    %180 = vector.load %arg2[%c0_47, %c256] : memref<64x768xbf16, #tpu.memory_space<vmem>>, vector<64x64xbf16>
    %cst_48 = arith.constant dense<0.000000e+00> : vector<32x64xf32>
    %181 = tpu.matmul %179, %180, %cst_48 {dimension_numbers = #tpu.dot_dimension_numbers<[1], [0], [0], [1], [0, 0, 1, 1], [], []>} : vector<32x64xbf16>, vector<64x64xbf16>, vector<32x64xf32> -> vector<32x64xf32>
    %c17 = arith.constant 17 : index
    %c0_49 = arith.constant 0 : index
    %182 = vector.load %arg1[%c17, %c0_49] : memref<32x128xf32, #tpu.memory_space<vmem>>, vector<1x64xf32>
    %183 = vector.broadcast %182 : vector<1x64xf32> to vector<32x64xf32>
    %184 = arith.addf %181, %183 : vector<32x64xf32>
    %185 = arith.addf %178, %184 : vector<32x64xf32>
    %c18 = arith.constant 18 : index
    %c0_50 = arith.constant 0 : index
    %186 = vector.load %arg1[%c18, %c0_50] : memref<32x128xf32, #tpu.memory_space<vmem>>, vector<1x64xf32>
    %c19 = arith.constant 19 : index
    %c0_51 = arith.constant 0 : index
    %187 = vector.load %arg1[%c19, %c0_51] : memref<32x128xf32, #tpu.memory_space<vmem>>, vector<1x64xf32>
    %cst_52 = arith.constant dense<0.000000e+00> : vector<32xf32>
    %188 = vector.multi_reduction <add>, %185, %cst_52 [1] : vector<32x64xf32> to vector<32xf32>
    %189 = vector.shape_cast %188 : vector<32xf32> to vector<32x1xf32>
    %cst_53 = arith.constant 6.400000e+01 : f32
    %190 = vector.broadcast %cst_53 : f32 to vector<32x1xf32>
    %191 = arith.divf %189, %190 : vector<32x1xf32>
    %192 = vector.broadcast %191 : vector<32x1xf32> to vector<32x64xf32>
    %193 = arith.subf %185, %192 : vector<32x64xf32>
    %194 = arith.mulf %193, %193 : vector<32x64xf32>
    %cst_54 = arith.constant dense<0.000000e+00> : vector<32xf32>
    %195 = vector.multi_reduction <add>, %194, %cst_54 [1] : vector<32x64xf32> to vector<32xf32>
    %196 = vector.shape_cast %195 : vector<32xf32> to vector<32x1xf32>
    %cst_55 = arith.constant 6.400000e+01 : f32
    %197 = vector.broadcast %cst_55 : f32 to vector<32x1xf32>
    %198 = arith.divf %196, %197 : vector<32x1xf32>
    %199 = vector.broadcast %191 : vector<32x1xf32> to vector<32x64xf32>
    %200 = arith.subf %185, %199 : vector<32x64xf32>
    %cst_56 = arith.constant 9.99999974E-6 : f32
    %201 = vector.broadcast %cst_56 : f32 to vector<32x1xf32>
    %202 = arith.addf %198, %201 : vector<32x1xf32>
    %203 = math.rsqrt %202 : vector<32x1xf32>
    %204 = vector.broadcast %203 : vector<32x1xf32> to vector<32x64xf32>
    %205 = arith.mulf %200, %204 : vector<32x64xf32>
    %206 = vector.broadcast %186 : vector<1x64xf32> to vector<32x64xf32>
    %207 = arith.mulf %205, %206 : vector<32x64xf32>
    %208 = vector.broadcast %187 : vector<1x64xf32> to vector<32x64xf32>
    %209 = arith.addf %207, %208 : vector<32x64xf32>
    %210 = arith.truncf %209 : vector<32x64xf32> to vector<32x64xbf16>
    %c0_57 = arith.constant 0 : index
    %c128 = arith.constant 128 : index
    %211 = vector.load %arg2[%c0_57, %c128] : memref<64x768xbf16, #tpu.memory_space<vmem>>, vector<64x128xbf16>
    %cst_58 = arith.constant dense<0.000000e+00> : vector<32x128xf32>
    %212 = tpu.matmul %210, %211, %cst_58 {dimension_numbers = #tpu.dot_dimension_numbers<[1], [0], [0], [1], [0, 0, 1, 1], [], []>} : vector<32x64xbf16>, vector<64x128xbf16>, vector<32x128xf32> -> vector<32x128xf32>
    %c20 = arith.constant 20 : index
    %c0_59 = arith.constant 0 : index
    %213 = vector.load %arg1[%c20, %c0_59] : memref<32x128xf32, #tpu.memory_space<vmem>>, vector<1x128xf32>
    %214 = vector.broadcast %213 : vector<1x128xf32> to vector<32x128xf32>
    %215 = arith.addf %212, %214 : vector<32x128xf32>
    %cst_60 = arith.constant 0.000000e+00 : f32
    %216 = vector.broadcast %cst_60 : f32 to vector<32x128xf32>
    %217 = arith.maximumf %215, %216 : vector<32x128xf32>
    %218 = vector.extract_strided_slice %217 {offsets = [0, 0], sizes = [32, 64], strides = [1, 1]} : vector<32x128xf32> to vector<32x64xf32>
    %219 = arith.truncf %218 : vector<32x64xf32> to vector<32x64xbf16>
    %c0_61 = arith.constant 0 : index
    %c512 = arith.constant 512 : index
    %220 = vector.load %arg2[%c0_61, %c512] : memref<64x768xbf16, #tpu.memory_space<vmem>>, vector<64x64xbf16>
    %cst_62 = arith.constant dense<0.000000e+00> : vector<32x64xf32>
    %221 = tpu.matmul %219, %220, %cst_62 {dimension_numbers = #tpu.dot_dimension_numbers<[1], [0], [0], [1], [0, 0, 1, 1], [], []>} : vector<32x64xbf16>, vector<64x64xbf16>, vector<32x64xf32> -> vector<32x64xf32>
    %222 = vector.extract_strided_slice %217 {offsets = [0, 64], sizes = [32, 64], strides = [1, 1]} : vector<32x128xf32> to vector<32x64xf32>
    %223 = arith.truncf %222 : vector<32x64xf32> to vector<32x64xbf16>
    %c0_63 = arith.constant 0 : index
    %c576 = arith.constant 576 : index
    %224 = vector.load %arg2[%c0_63, %c576] : memref<64x768xbf16, #tpu.memory_space<vmem>>, vector<64x64xbf16>
    %cst_64 = arith.constant dense<0.000000e+00> : vector<32x64xf32>
    %225 = tpu.matmul %223, %224, %cst_64 {dimension_numbers = #tpu.dot_dimension_numbers<[1], [0], [0], [1], [0, 0, 1, 1], [], []>} : vector<32x64xbf16>, vector<64x64xbf16>, vector<32x64xf32> -> vector<32x64xf32>
    %226 = arith.addf %221, %225 : vector<32x64xf32>
    %c21 = arith.constant 21 : index
    %c0_65 = arith.constant 0 : index
    %227 = vector.load %arg1[%c21, %c0_65] : memref<32x128xf32, #tpu.memory_space<vmem>>, vector<1x64xf32>
    %228 = vector.broadcast %227 : vector<1x64xf32> to vector<32x64xf32>
    %229 = arith.addf %226, %228 : vector<32x64xf32>
    %230 = arith.addf %209, %229 : vector<32x64xf32>
    %c22 = arith.constant 22 : index
    %c0_66 = arith.constant 0 : index
    %231 = vector.load %arg1[%c22, %c0_66] : memref<32x128xf32, #tpu.memory_space<vmem>>, vector<1x64xf32>
    %c23 = arith.constant 23 : index
    %c0_67 = arith.constant 0 : index
    %232 = vector.load %arg1[%c23, %c0_67] : memref<32x128xf32, #tpu.memory_space<vmem>>, vector<1x64xf32>
    %cst_68 = arith.constant dense<0.000000e+00> : vector<32xf32>
    %233 = vector.multi_reduction <add>, %230, %cst_68 [1] : vector<32x64xf32> to vector<32xf32>
    %234 = vector.shape_cast %233 : vector<32xf32> to vector<32x1xf32>
    %cst_69 = arith.constant 6.400000e+01 : f32
    %235 = vector.broadcast %cst_69 : f32 to vector<32x1xf32>
    %236 = arith.divf %234, %235 : vector<32x1xf32>
    %237 = vector.broadcast %236 : vector<32x1xf32> to vector<32x64xf32>
    %238 = arith.subf %230, %237 : vector<32x64xf32>
    %239 = arith.mulf %238, %238 : vector<32x64xf32>
    %cst_70 = arith.constant dense<0.000000e+00> : vector<32xf32>
    %240 = vector.multi_reduction <add>, %239, %cst_70 [1] : vector<32x64xf32> to vector<32xf32>
    %241 = vector.shape_cast %240 : vector<32xf32> to vector<32x1xf32>
    %cst_71 = arith.constant 6.400000e+01 : f32
    %242 = vector.broadcast %cst_71 : f32 to vector<32x1xf32>
    %243 = arith.divf %241, %242 : vector<32x1xf32>
    %244 = vector.broadcast %236 : vector<32x1xf32> to vector<32x64xf32>
    %245 = arith.subf %230, %244 : vector<32x64xf32>
    %cst_72 = arith.constant 9.99999974E-6 : f32
    %246 = vector.broadcast %cst_72 : f32 to vector<32x1xf32>
    %247 = arith.addf %243, %246 : vector<32x1xf32>
    %248 = math.rsqrt %247 : vector<32x1xf32>
    %249 = vector.broadcast %248 : vector<32x1xf32> to vector<32x64xf32>
    %250 = arith.mulf %245, %249 : vector<32x64xf32>
    %251 = vector.broadcast %231 : vector<1x64xf32> to vector<32x64xf32>
    %252 = arith.mulf %250, %251 : vector<32x64xf32>
    %253 = vector.broadcast %232 : vector<1x64xf32> to vector<32x64xf32>
    %254 = arith.addf %252, %253 : vector<32x64xf32>
    %255 = arith.truncf %254 : vector<32x64xf32> to vector<32x64xbf16>
    %c0_73 = arith.constant 0 : index
    %c384 = arith.constant 384 : index
    %256 = vector.load %arg2[%c0_73, %c384] : memref<64x768xbf16, #tpu.memory_space<vmem>>, vector<64x128xbf16>
    %cst_74 = arith.constant dense<0.000000e+00> : vector<32x128xf32>
    %257 = tpu.matmul %255, %256, %cst_74 {dimension_numbers = #tpu.dot_dimension_numbers<[1], [0], [0], [1], [0, 0, 1, 1], [], []>} : vector<32x64xbf16>, vector<64x128xbf16>, vector<32x128xf32> -> vector<32x128xf32>
    %c24 = arith.constant 24 : index
    %c0_75 = arith.constant 0 : index
    %258 = vector.load %arg1[%c24, %c0_75] : memref<32x128xf32, #tpu.memory_space<vmem>>, vector<1x128xf32>
    %259 = vector.broadcast %258 : vector<1x128xf32> to vector<32x128xf32>
    %260 = arith.addf %257, %259 : vector<32x128xf32>
    %261 = vector.extract_strided_slice %260 {offsets = [0, 64], sizes = [32, 64], strides = [1, 1]} : vector<32x128xf32> to vector<32x64xf32>
    %c25 = arith.constant 25 : index
    %c0_76 = arith.constant 0 : index
    %262 = vector.load %arg1[%c25, %c0_76] : memref<32x128xf32, #tpu.memory_space<vmem>>, vector<1x64xf32>
    %c26 = arith.constant 26 : index
    %c0_77 = arith.constant 0 : index
    %263 = vector.load %arg1[%c26, %c0_77] : memref<32x128xf32, #tpu.memory_space<vmem>>, vector<1x64xf32>
    %cst_78 = arith.constant dense<0.000000e+00> : vector<32xf32>
    %264 = vector.multi_reduction <add>, %261, %cst_78 [1] : vector<32x64xf32> to vector<32xf32>
    %265 = vector.shape_cast %264 : vector<32xf32> to vector<32x1xf32>
    %cst_79 = arith.constant 6.400000e+01 : f32
    %266 = vector.broadcast %cst_79 : f32 to vector<32x1xf32>
    %267 = arith.divf %265, %266 : vector<32x1xf32>
    %268 = vector.broadcast %267 : vector<32x1xf32> to vector<32x64xf32>
    %269 = arith.subf %261, %268 : vector<32x64xf32>
    %270 = arith.mulf %269, %269 : vector<32x64xf32>
    %cst_80 = arith.constant dense<0.000000e+00> : vector<32xf32>
    %271 = vector.multi_reduction <add>, %270, %cst_80 [1] : vector<32x64xf32> to vector<32xf32>
    %272 = vector.shape_cast %271 : vector<32xf32> to vector<32x1xf32>
    %cst_81 = arith.constant 6.400000e+01 : f32
    %273 = vector.broadcast %cst_81 : f32 to vector<32x1xf32>
    %274 = arith.divf %272, %273 : vector<32x1xf32>
    %275 = vector.broadcast %267 : vector<32x1xf32> to vector<32x64xf32>
    %276 = arith.subf %261, %275 : vector<32x64xf32>
    %cst_82 = arith.constant 9.99999974E-6 : f32
    %277 = vector.broadcast %cst_82 : f32 to vector<32x1xf32>
    %278 = arith.addf %274, %277 : vector<32x1xf32>
    %279 = math.rsqrt %278 : vector<32x1xf32>
    %280 = vector.broadcast %279 : vector<32x1xf32> to vector<32x64xf32>
    %281 = arith.mulf %276, %280 : vector<32x64xf32>
    %282 = vector.broadcast %262 : vector<1x64xf32> to vector<32x64xf32>
    %283 = arith.mulf %281, %282 : vector<32x64xf32>
    %284 = vector.broadcast %263 : vector<1x64xf32> to vector<32x64xf32>
    %285 = arith.addf %283, %284 : vector<32x64xf32>
    %cst_83 = arith.constant 0.000000e+00 : f32
    %286 = vector.broadcast %cst_83 : f32 to vector<32x64xf32>
    %287 = arith.maximumf %285, %286 : vector<32x64xf32>
    %288 = arith.truncf %287 : vector<32x64xf32> to vector<32x64xbf16>
    %c0_84 = arith.constant 0 : index
    %c320 = arith.constant 320 : index
    %289 = vector.load %arg2[%c0_84, %c320] : memref<64x768xbf16, #tpu.memory_space<vmem>>, vector<64x64xbf16>
    %cst_85 = arith.constant dense<0.000000e+00> : vector<32x64xf32>
    %290 = tpu.matmul %288, %289, %cst_85 {dimension_numbers = #tpu.dot_dimension_numbers<[1], [0], [0], [1], [0, 0, 1, 1], [], []>} : vector<32x64xbf16>, vector<64x64xbf16>, vector<32x64xf32> -> vector<32x64xf32>
    %c27 = arith.constant 27 : index
    %c0_86 = arith.constant 0 : index
    %291 = vector.load %arg1[%c27, %c0_86] : memref<32x128xf32, #tpu.memory_space<vmem>>, vector<1x64xf32>
    %292 = vector.broadcast %291 : vector<1x64xf32> to vector<32x64xf32>
    %293 = arith.addf %290, %292 : vector<32x64xf32>
    %c28 = arith.constant 28 : index
    %c0_87 = arith.constant 0 : index
    %294 = vector.load %arg1[%c28, %c0_87] : memref<32x128xf32, #tpu.memory_space<vmem>>, vector<1x64xf32>
    %c29 = arith.constant 29 : index
    %c0_88 = arith.constant 0 : index
    %295 = vector.load %arg1[%c29, %c0_88] : memref<32x128xf32, #tpu.memory_space<vmem>>, vector<1x64xf32>
    %cst_89 = arith.constant dense<0.000000e+00> : vector<32xf32>
    %296 = vector.multi_reduction <add>, %293, %cst_89 [1] : vector<32x64xf32> to vector<32xf32>
    %297 = vector.shape_cast %296 : vector<32xf32> to vector<32x1xf32>
    %cst_90 = arith.constant 6.400000e+01 : f32
    %298 = vector.broadcast %cst_90 : f32 to vector<32x1xf32>
    %299 = arith.divf %297, %298 : vector<32x1xf32>
    %300 = vector.broadcast %299 : vector<32x1xf32> to vector<32x64xf32>
    %301 = arith.subf %293, %300 : vector<32x64xf32>
    %302 = arith.mulf %301, %301 : vector<32x64xf32>
    %cst_91 = arith.constant dense<0.000000e+00> : vector<32xf32>
    %303 = vector.multi_reduction <add>, %302, %cst_91 [1] : vector<32x64xf32> to vector<32xf32>
    %304 = vector.shape_cast %303 : vector<32xf32> to vector<32x1xf32>
    %cst_92 = arith.constant 6.400000e+01 : f32
    %305 = vector.broadcast %cst_92 : f32 to vector<32x1xf32>
    %306 = arith.divf %304, %305 : vector<32x1xf32>
    %307 = vector.broadcast %299 : vector<32x1xf32> to vector<32x64xf32>
    %308 = arith.subf %293, %307 : vector<32x64xf32>
    %cst_93 = arith.constant 9.99999974E-6 : f32
    %309 = vector.broadcast %cst_93 : f32 to vector<32x1xf32>
    %310 = arith.addf %306, %309 : vector<32x1xf32>
    %311 = math.rsqrt %310 : vector<32x1xf32>
    %312 = vector.broadcast %311 : vector<32x1xf32> to vector<32x64xf32>
    %313 = arith.mulf %308, %312 : vector<32x64xf32>
    %314 = vector.broadcast %294 : vector<1x64xf32> to vector<32x64xf32>
    %315 = arith.mulf %313, %314 : vector<32x64xf32>
    %316 = vector.broadcast %295 : vector<1x64xf32> to vector<32x64xf32>
    %317 = arith.addf %315, %316 : vector<32x64xf32>
    %cst_94 = arith.constant 0.000000e+00 : f32
    %318 = vector.broadcast %cst_94 : f32 to vector<32x64xf32>
    %319 = arith.maximumf %317, %318 : vector<32x64xf32>
    %320 = arith.truncf %319 : vector<32x64xf32> to vector<32x64xbf16>
    %c0_95 = arith.constant 0 : index
    %c640 = arith.constant 640 : index
    %321 = vector.load %arg2[%c0_95, %c640] : memref<64x768xbf16, #tpu.memory_space<vmem>>, vector<64x128xbf16>
    %cst_96 = arith.constant dense<0.000000e+00> : vector<32x128xf32>
    %322 = tpu.matmul %320, %321, %cst_96 {dimension_numbers = #tpu.dot_dimension_numbers<[1], [0], [0], [1], [0, 0, 1, 1], [], []>} : vector<32x64xbf16>, vector<64x128xbf16>, vector<32x128xf32> -> vector<32x128xf32>
    %c30 = arith.constant 30 : index
    %c0_97 = arith.constant 0 : index
    %323 = vector.load %arg1[%c30, %c0_97] : memref<32x128xf32, #tpu.memory_space<vmem>>, vector<1x128xf32>
    %324 = vector.broadcast %323 : vector<1x128xf32> to vector<32x128xf32>
    %325 = arith.addf %322, %324 : vector<32x128xf32>
    %c15_i32 = arith.constant 15 : i32
    %326 = vector.broadcast %c15_i32 : i32 to vector<32x128xi32>
    %327 = arith.cmpi sge, %12, %326 : vector<32x128xi32>
    %c24_i32 = arith.constant 24 : i32
    %328 = vector.broadcast %c24_i32 : i32 to vector<32x128xi32>
    %329 = arith.cmpi slt, %12, %328 : vector<32x128xi32>
    %330 = arith.andi %327, %329 : vector<32x128xi1>
    %cst_98 = arith.constant 0xFF800000 : f32
    %331 = vector.broadcast %cst_98 : f32 to vector<32x128xf32>
    %332 = arith.select %330, %260, %331 : vector<32x128xi1>, vector<32x128xf32>
    %cst_99 = arith.constant dense<0xFF800000> : vector<32xf32>
    %333 = vector.multi_reduction <maximumf>, %332, %cst_99 [1] : vector<32x128xf32> to vector<32xf32>
    %334 = vector.shape_cast %333 : vector<32xf32> to vector<32x1xf32>
    %335 = vector.broadcast %334 : vector<32x1xf32> to vector<32x128xf32>
    %336 = arith.subf %332, %335 : vector<32x128xf32>
    %337 = math.exp %336 : vector<32x128xf32>
    %cst_100 = arith.constant dense<0.000000e+00> : vector<32xf32>
    %338 = vector.multi_reduction <add>, %337, %cst_100 [1] : vector<32x128xf32> to vector<32xf32>
    %339 = vector.shape_cast %338 : vector<32xf32> to vector<32x1xf32>
    %340 = vector.broadcast %339 : vector<32x1xf32> to vector<32x128xf32>
    %341 = arith.divf %337, %340 : vector<32x128xf32>
    %c15_i32_101 = arith.constant 15 : i32
    %342 = vector.broadcast %c15_i32_101 : i32 to vector<32x128xi32>
    %343 = arith.cmpi slt, %12, %342 : vector<32x128xi32>
    %cst_102 = arith.constant 0.000000e+00 : f32
    %344 = vector.broadcast %cst_102 : f32 to vector<32x128xf32>
    %345 = arith.select %343, %260, %344 : vector<32x128xi1>, vector<32x128xf32>
    %346 = arith.addf %345, %325 : vector<32x128xf32>
    %347 = arith.addf %346, %341 : vector<32x128xf32>
    %c0_103 = arith.constant 0 : index
    %c0_104 = arith.constant 0 : index
    %348 = vector.load %arg3[%c0_103, %c0_104] : memref<32x128xf32, #tpu.memory_space<vmem>>, vector<32x128xf32>
    tpu.vector_store %arg3[%c0_103, %c0_104], %347 {strides = array<i32>} : memref<32x128xf32, #tpu.memory_space<vmem>>, vector<32x128xf32>,
    return
  }
}

</mosaic_0001>

<llo_original>
// kernel: tpu_custom_call.1
$region0: #{tpu_custom_call.1}
  #allocation0 [shape = 'u32[]', space=smem, size = 0x4, offset = 0x4, fixed_abs, tag = 'smem constant byte address 0x4 - core index']
  #allocation1 [shape = 'u32[144,128]{1,0:T(1,128)}', space=vmem, size = 0x12000, scoped, tag = 'internal scratch']
  %s0 = inlined_call_operand.vmem [shape: bf16[128,64], index: 0, kind: input, shape index: {}]
  %s1 = inlined_call_operand.vmem [shape: f32[32,128], index: 1, kind: input, shape index: {}]
  %s2 = inlined_call_operand.hbm [shape: bf16[64,768], index: 2, kind: input, shape index: {}]
  %s3 = inlined_call_operand.hbm [shape: f32[32,128], index: 3, kind: output, shape index: {}]
  %s4 = sld [smem:[#allocation0]]
  $region26: #{tpu_custom_call.1} parent=0
    _
  %s6 = ssub.s32 1, %s4
  %s7 = scalar_select 0, %s6, %s4
  $region1: #{tpu_custom_call.1} parent=0
    #allocation2 [shape = 'u8[98304]{0}', space=vmem, size = 0x18000, scoped, tag = 'input window, operand 2, single buffered']
    #allocation3 [shape = 's32[1]{0}', space=sflag, size = 0x4, scoped, tag = 'scoped memory for tpu_custom_call.1']
    #allocation4 [shape = 's32[1]{0}', space=sflag, size = 0x4, scoped, tag = 'scoped memory for tpu_custom_call.1']
    #allocation5 [shape = 'u8[16384]{0}', space=vmem, size = 0x4000, scoped, tag = 'output window, operand 0, single buffered']
    %8 = vsyncpa [#allocation3], 0
    %9 = vsyncpa [#allocation4], 0
    // Predicated region
    $region2: #{tpu_custom_call.1} parent=1 // pred_check
      _
    $region3: #{tpu_custom_call.1} parent=1 // pred_check_branch
      %11 = sbr.rel (0) target = $region5
    $region4: #{tpu_custom_call.1} parent=1 // pred_region
      _
    $region5: #{tpu_custom_call.1} parent=1 // pred_fallthru
      _
    // Predicated region
    $region6: #{tpu_custom_call.1} parent=1 // pred_check
      _
    $region7: #{tpu_custom_call.1} parent=1 // pred_check_branch
      %13 = sbr.rel (0) target = $region9
    $region8: #{tpu_custom_call.1} parent=1 // pred_region
      _
    $region9: #{tpu_custom_call.1} parent=1 // pred_fallthru
      _
    // Predicated region
    $region10: #{tpu_custom_call.1} parent=1 // pred_check
      _
    $region11: #{tpu_custom_call.1} parent=1 // pred_check_branch
      %15 = sbr.rel (0) target = $region13
    $region12: #{tpu_custom_call.1} parent=1 // pred_region
      %s17 = ssub.s32 3072, 3072
      %18 = vsyncadd [#allocation3], %s17
      %s19 = sshll.u32 [#allocation2], 4
      %s20 = int_to_ptr.vmem [resolvable:$true] %s19
      %25 = dma.hbm_to_vmem [thread:$0]  %s2, 3072, %s20, [#allocation3], 384, 384, 24
    $region13: #{tpu_custom_call.1} parent=1 // pred_fallthru
      _
    // Predicated region
    $region14: #{tpu_custom_call.1} parent=1 // pred_check
      _
    $region15: #{tpu_custom_call.1} parent=1 // pred_check_branch
      %27 = sbr.rel (0) target = $region17
    $region16: #{tpu_custom_call.1} parent=1 // pred_region
      %28 = dma.done [#allocation3], 3072
    $region17: #{tpu_custom_call.1} parent=1 // pred_fallthru
      _
    %v30 = vld [vmem:[%s0] sm:$0xf]
    %v31 = vld [vmem:[%s0 + $0x4] sm:$0xf]
    %v32 = vld [vmem:[%s0 + $0x8] sm:$0xf]
    %v33 = vld [vmem:[%s0 + $0xc] sm:$0xf]
    %v34 = vld [vmem:[%s0 + $0x10] sm:$0xf]
    %v35 = vld [vmem:[%s0 + $0x14] sm:$0xf]
    %v36 = vld [vmem:[%s0 + $0x18] sm:$0xf]
    %v37 = vld [vmem:[%s0 + $0x1c] sm:$0xf]
    %v38 = vld [vmem:[%s0 + $0x20] sm:$0xf]
    %v39 = vld [vmem:[%s0 + $0x24] sm:$0xf]
    %v40 = vld [vmem:[%s0 + $0x28] sm:$0xf]
    %v41 = vld [vmem:[%s0 + $0x2c] sm:$0xf]
    %v42 = vld [vmem:[%s0 + $0x30] sm:$0xf]
    %v43 = vld [vmem:[%s0 + $0x34] sm:$0xf]
    %v44 = vld [vmem:[%s0 + $0x38] sm:$0xf]
    %v45 = vld [vmem:[%s0 + $0x3c] sm:$0xf]
    %v46 = vld [vmem:[#allocation2] sm:$0xf]
    %v47 = vld [vmem:[#allocation2 + $0x18] sm:$0xf]
    %v48 = vld [vmem:[#allocation2 + $0x30] sm:$0xf]
    %v49 = vld [vmem:[#allocation2 + $0x48] sm:$0xf]
    %v50 = vld [vmem:[#allocation2 + $0x60] sm:$0xf]
    %v51 = vld [vmem:[#allocation2 + $0x78] sm:$0xf]
    %v52 = vld [vmem:[#allocation2 + $0x90] sm:$0xf]
    %v53 = vld [vmem:[#allocation2 + $0xa8] sm:$0xf]
    %v54 = vld [vmem:[%s1 + $0x10] sm:$0x1]
    %v55 = vlaneseq
    %v56 = vshrl.u32 %v55, 7
    %v57 = vsub.s32 0, %v56
    %v58 = vrot.slane %v54, %v57
    %v75 = vunpack.c.l.b16 %v30
    %v76 = vunpack.c.l.b16 %v31
    %v77 = vunpack.c.l.b16 %v32
    %v78 = vunpack.c.l.b16 %v33
    %v79 = vunpack.c.l.b16 %v34
    %v80 = vunpack.c.l.b16 %v35
    %v81 = vunpack.c.l.b16 %v36
    %v82 = vunpack.c.l.b16 %v37
    %v83 = vunpack.c.l.b16 %v38
    %v84 = vunpack.c.l.b16 %v39
    %v85 = vunpack.c.l.b16 %v40
    %v86 = vunpack.c.l.b16 %v41
    %v87 = vunpack.c.l.b16 %v42
    %v88 = vunpack.c.l.b16 %v43
    %v89 = vunpack.c.l.b16 %v44
    %v90 = vunpack.c.l.b16 %v45
    %v91 = vpack.c.b16 %v76, %v75
    %v92 = vpack.c.b16 %v78, %v77
    %v93 = vpack.c.b16 %v80, %v79
    %v94 = vpack.c.b16 %v82, %v81
    %v95 = vpack.c.b16 %v84, %v83
    %v96 = vpack.c.b16 %v86, %v85
    %v97 = vpack.c.b16 %v88, %v87
    %v98 = vpack.c.b16 %v90, %v89
    %v107 = vunpack.c.l.b16 %v46
    %v108 = vunpack.c.l.b16 %v47
    %v109 = vunpack.c.l.b16 %v48
    %v110 = vunpack.c.l.b16 %v49
    %v111 = vunpack.c.l.b16 %v50
    %v112 = vunpack.c.l.b16 %v51
    %v113 = vunpack.c.l.b16 %v52
    %v114 = vunpack.c.l.b16 %v53
    %v115 = vpack.c.b16 %v108, %v107
    %v116 = vpack.c.b16 %v110, %v109
    %v117 = vpack.c.b16 %v112, %v111
    %v118 = vpack.c.b16 %v114, %v113
    %vm123 = vcmask 523264
    %v125 = vsel %vm123, %v91, 0
    %v128 = vsel %vm123, %v92, 0
    %v131 = vsel %vm123, %v93, 0
    %v134 = vsel %vm123, %v94, 0
    %v137 = vsel %vm123, %v95, 0
    %v140 = vsel %vm123, %v96, 0
    %v143 = vsel %vm123, %v97, 0
    %v146 = vsel %vm123, %v98, 0
    %148 = vmatprep.subr.bf16.mxu0 0
    %149 = vmatpush1.bf16.msra.mxu0 %v115
    %150 = vmatprep.subr.bf16.mxu0 0
    %151 = vmatpush1.bf16.msra.mxu0 %v116
    %152 = vmatprep.subr.bf16.mxu0 0
    %153 = vmatpush1.bf16.msra.mxu0 %v117
    %154 = vmatprep.subr.bf16.mxu0 0
    %155 = vmatpush1.bf16.msra.mxu0 %v118
    %156 = vmatprep.subr.bf16.mxu0 0
    %157 = vmatpush1.bf16.msra.mxu0 0
    %158 = vmatprep.subr.bf16.mxu0 0
    %159 = vmatpush1.bf16.msra.mxu0 0
    %160 = vmatprep.subr.bf16.mxu0 0
    %161 = vmatpush1.bf16.msra.mxu0 0
    %162 = vmatprep.subr.bf16.mxu0 0
    %163 = vmatpush1.bf16.msra.mxu0 0
    %164 = vmatprep.subr.bf16.mxu0 0
    %165 = vmatpush1.bf16.msra.mxu0 0
    %166 = vmatprep.subr.bf16.mxu0 0
    %167 = vmatpush1.bf16.msra.mxu0 0
    %168 = vmatprep.subr.bf16.mxu0 0
    %169 = vmatpush1.bf16.msra.mxu0 0
    %170 = vmatprep.subr.bf16.mxu0 0
    %171 = vmatpush1.bf16.msra.mxu0 0
    %172 = vmatprep.subr.bf16.mxu0 0
    %173 = vmatpush1.bf16.msra.mxu0 0
    %174 = vmatprep.subr.bf16.mxu0 0
    %175 = vmatpush1.bf16.msra.mxu0 0
    %176 = vmatprep.subr.bf16.mxu0 0
    %177 = vmatpush1.bf16.msra.mxu0 0
    %178 = vmatprep.subr.bf16.mxu0 0
    %179 = vmatpush1.bf16.msra.mxu0 0
    %180 = vmatprep.mubr.bf16.mxu0 0
    %181 = vmatmul.mubr.bf16.gmra.mrb[0].mxu0 %v125
    %v182 = vpop.f32.mrb[0].mxu0
    %v183 = vadd.f32 %v58, %v182
    %v184 = vpop.f32.mrb[0].mxu0
    %v185 = vpop.f32.mrb[0].mxu0
    %v186 = vadd.f32 %v58, %v185
    %v187 = vpop.f32.mrb[0].mxu0
    %188 = vmatprep.mubr.bf16.mxu0 0
    %189 = vmatmul.mubr.bf16.gmra.mrb[0].mxu0 %v128
    %v190 = vpop.f32.mrb[0].mxu0
    %v191 = vadd.f32 %v58, %v190
    %v192 = vpop.f32.mrb[0].mxu0
    %v193 = vpop.f32.mrb[0].mxu0
    %v194 = vadd.f32 %v58, %v193
    %v195 = vpop.f32.mrb[0].mxu0
    %196 = vmatprep.mubr.bf16.mxu0 0
    %197 = vmatmul.mubr.bf16.gmra.mrb[0].mxu0 %v131
    %v198 = vpop.f32.mrb[0].mxu0
    %v199 = vadd.f32 %v58, %v198
    %v200 = vpop.f32.mrb[0].mxu0
    %v201 = vpop.f32.mrb[0].mxu0
    %v202 = vadd.f32 %v58, %v201
    %v203 = vpop.f32.mrb[0].mxu0
    %204 = vmatprep.mubr.bf16.mxu0 0
    %205 = vmatmul.mubr.bf16.gmra.mrb[0].mxu0 %v134
    %v206 = vpop.f32.mrb[0].mxu0
    %v207 = vadd.f32 %v58, %v206
    %v208 = vpop.f32.mrb[0].mxu0
    %v209 = vpop.f32.mrb[0].mxu0
    %v210 = vadd.f32 %v58, %v209
    %v211 = vpop.f32.mrb[0].mxu0
    %212 = vmatprep.mubr.bf16.mxu0 0
    %213 = vmatmul.mubr.bf16.gmra.mrb[0].mxu0 %v137
    %v214 = vpop.f32.mrb[0].mxu0
    %v215 = vadd.f32 %v58, %v214
    %v216 = vpop.f32.mrb[0].mxu0
    %v217 = vpop.f32.mrb[0].mxu0
    %v218 = vadd.f32 %v58, %v217
    %v219 = vpop.f32.mrb[0].mxu0
    %220 = vmatprep.mubr.bf16.mxu0 0
    %221 = vmatmul.mubr.bf16.gmra.mrb[0].mxu0 %v140
    %v222 = vpop.f32.mrb[0].mxu0
    %v223 = vadd.f32 %v58, %v222
    %v224 = vpop.f32.mrb[0].mxu0
    %v225 = vpop.f32.mrb[0].mxu0
    %v226 = vadd.f32 %v58, %v225
    %v227 = vpop.f32.mrb[0].mxu0
    %228 = vmatprep.mubr.bf16.mxu0 0
    %229 = vmatmul.mubr.bf16.gmra.mrb[0].mxu0 %v143
    %v230 = vpop.f32.mrb[0].mxu0
    %v231 = vadd.f32 %v58, %v230
    %v232 = vpop.f32.mrb[0].mxu0
    %v233 = vpop.f32.mrb[0].mxu0
    %v234 = vadd.f32 %v58, %v233
    %v235 = vpop.f32.mrb[0].mxu0
    %236 = vmatprep.mubr.bf16.mxu0 0
    %237 = vmatmul.mubr.bf16.gmra.mrb[0].mxu0 %v146
    %v238 = vpop.f32.mrb[0].mxu0
    %v239 = vadd.f32 %v58, %v238
    %v240 = vpop.f32.mrb[0].mxu0
    %v241 = vpop.f32.mrb[0].mxu0
    %v242 = vadd.f32 %v58, %v241
    %v243 = vpop.f32.mrb[0].mxu0
    %244 = vdwg.mxu0
    %v245 = vld [vmem:[%s1] sm:$0xff]
    %v246 = vld [vmem:[%s1 + $0x8] sm:$0xff]
    %v247 = vpack.c.bf16 %v246, %v245
    %v248 = vlaneseq
    %v249 = vand.u32 %v248, 127
    %v250 = vpack.c.bf16 %v186, %v183
    %v251 = vpack.c.bf16 %v194, %v191
    %v252 = vpack.c.bf16 %v202, %v199
    %v253 = vpack.c.bf16 %v210, %v207
    %255 = vrot.lane.b32.xlu0 %v247, 64
    %v256 = vpop.permute.xlu0 %255
    %vm257 = vcmask 130048
    %v259 = vsel %vm257, %v256, 0
    %v262 = vsel %vm257, %v250, 0
    %v265 = vsel %vm257, %v251, 0
    %v268 = vsel %vm257, %v252, 0
    %v271 = vsel %vm257, %v253, 0
    %273 = vmatprep.subr.bf16.mxu0 0
    %274 = vmatpush1.bf16.xpose.msra.mxu0 %v262
    %275 = vmatprep.subr.bf16.mxu0 0
    %276 = vmatpush1.bf16.xpose.msra.mxu0 %v265
    %277 = vmatprep.subr.bf16.mxu0 0
    %278 = vmatpush1.bf16.xpose.msra.mxu0 %v268
    %279 = vmatprep.subr.bf16.mxu0 0
    %280 = vmatpush1.bf16.xpose.msra.mxu0 %v271
    %281 = vmatprep.subr.bf16.mxu0 0
    %282 = vmatpush1.bf16.xpose.msra.mxu0 0
    %283 = vmatprep.subr.bf16.mxu0 0
    %284 = vmatpush1.bf16.xpose.msra.mxu0 0
    %285 = vmatprep.subr.bf16.mxu0 0
    %286 = vmatpush1.bf16.xpose.msra.mxu0 0
    %287 = vmatprep.subr.bf16.mxu0 0
    %288 = vmatpush1.bf16.xpose.msra.mxu0 0
    %289 = vmatprep.subr.bf16.mxu0 0
    %290 = vmatpush1.bf16.xpose.msra.mxu0 0
    %291 = vmatprep.subr.bf16.mxu0 0
    %292 = vmatpush1.bf16.xpose.msra.mxu0 0
    %293 = vmatprep.subr.bf16.mxu0 0
    %294 = vmatpush1.bf16.xpose.msra.mxu0 0
    %295 = vmatprep.subr.bf16.mxu0 0
    %296 = vmatpush1.bf16.xpose.msra.mxu0 0
    %297 = vmatprep.subr.bf16.mxu0 0
    %298 = vmatpush1.bf16.xpose.msra.mxu0 0
    %299 = vmatprep.subr.bf16.mxu0 0
    %300 = vmatpush1.bf16.xpose.msra.mxu0 0
    %301 = vmatprep.subr.bf16.mxu0 0
    %302 = vmatpush1.bf16.xpose.msra.mxu0 0
    %303 = vmatprep.subr.bf16.mxu0 0
    %304 = vmatpush1.bf16.xpose.msra.mxu0 0
    %305 = vmatprep.mubr.bf16.mxu0 0
    %306 = vmatmul.mubr.bf16.gmra.mrb[0].mxu0 %v259
    %v307 = vpop.f32.mrb[0].mxu0
    %v308 = vadd.f32 0.0, %v307
    %v309 = vpop.f32.mrb[0].mxu0
    %v310 = vpop.f32.mrb[0].mxu0
    %v311 = vadd.f32 0.0, %v310
    %v312 = vpop.f32.mrb[0].mxu0
    %313 = vdwg.mxu0
    %v314 = vsel %vm123, %v308, -inf
    %315 = vmax.xlane.f32.xlu0 %v314
    %v316 = vpop.xlane.xlu0 %315
    %v317 = vsel %vm123, %v311, -inf
    %318 = vmax.xlane.f32.xlu0 %v317
    %v319 = vpop.xlane.xlu0 %318
    %v320 = vsub.f32 %v308, %v316
    %v321 = vsub.f32 %v311, %v319
    %v322 = vmul.f32 %v320, 1.442695
    %v323 = vpow.pop %v322
    %v324 = vmul.f32 %v321, 1.442695
    %v325 = vpow.pop %v324
    %v326 = vsel %vm123, %v323, 0.0
    %327 = vadd.xlane.f32.xlu0 %v326
    %v328 = vpop.xlane.xlu0 %327
    %v329 = vsel %vm123, %v325, 0.0
    %330 = vadd.xlane.f32.xlu0 %v329
    %v331 = vpop.xlane.xlu0 %330
    %v332 = vrcp.pop %v328
    %v333 = vrcp.pop %v331
    %v334 = vmul.f32 %v323, %v332
    %v335 = vmul.f32 %v325, %v333
    %v336 = vpack.c.bf16 %v335, %v334
    %341 = vrot.lane.b32.xlu0 %v250, 64
    %v342 = vpop.permute.xlu0 %341
    %343 = vrot.lane.b32.xlu0 %v251, 64
    %v344 = vpop.permute.xlu0 %343
    %345 = vrot.lane.b32.xlu0 %v252, 64
    %v346 = vpop.permute.xlu0 %345
    %347 = vrot.lane.b32.xlu0 %v253, 64
    %v348 = vpop.permute.xlu0 %347
    %v354 = vsel %vm123, %v336, 0
    %356 = vmatprep.subr.bf16.mxu0 0
    %357 = vmatpush1.bf16.msra.mxu0 %v342
    %358 = vmatprep.subr.bf16.mxu0 0
    %359 = vmatpush1.bf16.msra.mxu0 %v344
    %360 = vmatprep.subr.bf16.mxu0 0
    %361 = vmatpush1.bf16.msra.mxu0 %v346
    %362 = vmatprep.subr.bf16.mxu0 0
    %363 = vmatpush1.bf16.msra.mxu0 %v348
    %364 = vmatprep.subr.bf16.mxu0 0
    %365 = vmatpush1.bf16.msra.mxu0 0
    %366 = vmatprep.subr.bf16.mxu0 0
    %367 = vmatpush1.bf16.msra.mxu0 0
    %368 = vmatprep.subr.bf16.mxu0 0
    %369 = vmatpush1.bf16.msra.mxu0 0
    %370 = vmatprep.subr.bf16.mxu0 0
    %371 = vmatpush1.bf16.msra.mxu0 0
    %372 = vmatprep.subr.bf16.mxu0 0
    %373 = vmatpush1.bf16.msra.mxu0 0
    %374 = vmatprep.subr.bf16.mxu0 0
    %375 = vmatpush1.bf16.msra.mxu0 0
    %376 = vmatprep.subr.bf16.mxu0 0
    %377 = vmatpush1.bf16.msra.mxu0 0
    %378 = vmatprep.subr.bf16.mxu0 0
    %379 = vmatpush1.bf16.msra.mxu0 0
    %380 = vmatprep.subr.bf16.mxu0 0
    %381 = vmatpush1.bf16.msra.mxu0 0
    %382 = vmatprep.subr.bf16.mxu0 0
    %383 = vmatpush1.bf16.msra.mxu0 0
    %384 = vmatprep.subr.bf16.mxu0 0
    %385 = vmatpush1.bf16.msra.mxu0 0
    %386 = vmatprep.subr.bf16.mxu0 0
    %387 = vmatpush1.bf16.msra.mxu0 0
    %388 = vmatprep.mubr.bf16.mxu0 0
    %389 = vmatmul.mubr.bf16.gmra.mrb[0].mxu0 %v354
    %v390 = vpop.f32.mrb[0].mxu0
    %v391 = vadd.f32 0.0, %v390
    %v392 = vpop.f32.mrb[0].mxu0
    %v393 = vpop.f32.mrb[0].mxu0
    %v394 = vadd.f32 0.0, %v393
    %v395 = vpop.f32.mrb[0].mxu0
    %396 = vdwg.mxu0
    %397 = vrot.lane.b32.xlu0 %v247, 48
    %v398 = vpop.permute.xlu0 %397
    %399 = vrot.lane.b32.xlu0 %v250, 112
    %v400 = vpop.permute.xlu0 %399
    %401 = vrot.lane.b32.xlu0 %v251, 112
    %v402 = vpop.permute.xlu0 %401
    %403 = vrot.lane.b32.xlu0 %v252, 112
    %v404 = vpop.permute.xlu0 %403
    %405 = vrot.lane.b32.xlu0 %v253, 112
    %v406 = vpop.permute.xlu0 %405
    %v408 = vsel %vm257, %v398, 0
    %v411 = vsel %vm257, %v400, 0
    %v414 = vsel %vm257, %v402, 0
    %v417 = vsel %vm257, %v404, 0
    %v420 = vsel %vm257, %v406, 0
    %422 = vmatprep.subr.bf16.mxu0 0
    %423 = vmatpush1.bf16.xpose.msra.mxu0 %v411
    %424 = vmatprep.subr.bf16.mxu0 0
    %425 = vmatpush1.bf16.xpose.msra.mxu0 %v414
    %426 = vmatprep.subr.bf16.mxu0 0
    %427 = vmatpush1.bf16.xpose.msra.mxu0 %v417
    %428 = vmatprep.subr.bf16.mxu0 0
    %429 = vmatpush1.bf16.xpose.msra.mxu0 %v420
    %430 = vmatprep.subr.bf16.mxu0 0
    %431 = vmatpush1.bf16.xpose.msra.mxu0 0
    %432 = vmatprep.subr.bf16.mxu0 0
    %433 = vmatpush1.bf16.xpose.msra.mxu0 0
    %434 = vmatprep.subr.bf16.mxu0 0
    %435 = vmatpush1.bf16.xpose.msra.mxu0 0
    %436 = vmatprep.subr.bf16.mxu0 0
    %437 = vmatpush1.bf16.xpose.msra.mxu0 0
    %438 = vmatprep.subr.bf16.mxu0 0
    %439 = vmatpush1.bf16.xpose.msra.mxu0 0
    %440 = vmatprep.subr.bf16.mxu0 0
    %441 = vmatpush1.bf16.xpose.msra.mxu0 0
    %442 = vmatprep.subr.bf16.mxu0 0
    %443 = vmatpush1.bf16.xpose.msra.mxu0 0
    %444 = vmatprep.subr.bf16.mxu0 0
    %445 = vmatpush1.bf16.xpose.msra.mxu0 0
    %446 = vmatprep.subr.bf16.mxu0 0
    %447 = vmatpush1.bf16.xpose.msra.mxu0 0
    %448 = vmatprep.subr.bf16.mxu0 0
    %449 = vmatpush1.bf16.xpose.msra.mxu0 0
    %450 = vmatprep.subr.bf16.mxu0 0
    %451 = vmatpush1.bf16.xpose.msra.mxu0 0
    %452 = vmatprep.subr.bf16.mxu0 0
    %453 = vmatpush1.bf16.xpose.msra.mxu0 0
    %454 = vmatprep.mubr.bf16.mxu0 0
    %455 = vmatmul.mubr.bf16.gmra.mrb[0].mxu0 %v408
    %v456 = vpop.f32.mrb[0].mxu0
    %v457 = vadd.f32 0.0, %v456
    %v458 = vpop.f32.mrb[0].mxu0
    %v459 = vpop.f32.mrb[0].mxu0
    %v460 = vadd.f32 0.0, %v459
    %v461 = vpop.f32.mrb[0].mxu0
    %462 = vdwg.mxu0
    %v463 = vsel %vm123, %v457, -inf
    %464 = vmax.xlane.f32.xlu0 %v463
    %v465 = vpop.xlane.xlu0 %464
    %v466 = vsel %vm123, %v460, -inf
    %467 = vmax.xlane.f32.xlu0 %v466
    %v468 = vpop.xlane.xlu0 %467
    %v469 = vsub.f32 %v457, %v465
    %v470 = vsub.f32 %v460, %v468
    %v471 = vmul.f32 %v469, 1.442695
    %v472 = vpow.pop %v471
    %v473 = vmul.f32 %v470, 1.442695
    %v474 = vpow.pop %v473
    %v475 = vsel %vm123, %v472, 0.0
    %476 = vadd.xlane.f32.xlu0 %v475
    %v477 = vpop.xlane.xlu0 %476
    %v478 = vsel %vm123, %v474, 0.0
    %479 = vadd.xlane.f32.xlu0 %v478
    %v480 = vpop.xlane.xlu0 %479
    %v481 = vrcp.pop %v477
    %v482 = vrcp.pop %v480
    %v483 = vmul.f32 %v472, %v481
    %v484 = vmul.f32 %v474, %v482
    %v485 = vpack.c.bf16 %v484, %v483
    %v487 = vsel %vm123, %v485, 0
    %489 = vmatprep.subr.bf16.mxu0 0
    %490 = vmatpush1.bf16.msra.mxu0 %v342
    %491 = vmatprep.subr.bf16.mxu0 0
    %492 = vmatpush1.bf16.msra.mxu0 %v344
    %493 = vmatprep.subr.bf16.mxu0 0
    %494 = vmatpush1.bf16.msra.mxu0 %v346
    %495 = vmatprep.subr.bf16.mxu0 0
    %496 = vmatpush1.bf16.msra.mxu0 %v348
    %497 = vmatprep.subr.bf16.mxu0 0
    %498 = vmatpush1.bf16.msra.mxu0 0
    %499 = vmatprep.subr.bf16.mxu0 0
    %500 = vmatpush1.bf16.msra.mxu0 0
    %501 = vmatprep.subr.bf16.mxu0 0
    %502 = vmatpush1.bf16.msra.mxu0 0
    %503 = vmatprep.subr.bf16.mxu0 0
    %504 = vmatpush1.bf16.msra.mxu0 0
    %505 = vmatprep.subr.bf16.mxu0 0
    %506 = vmatpush1.bf16.msra.mxu0 0
    %507 = vmatprep.subr.bf16.mxu0 0
    %508 = vmatpush1.bf16.msra.mxu0 0
    %509 = vmatprep.subr.bf16.mxu0 0
    %510 = vmatpush1.bf16.msra.mxu0 0
    %511 = vmatprep.subr.bf16.mxu0 0
    %512 = vmatpush1.bf16.msra.mxu0 0
    %513 = vmatprep.subr.bf16.mxu0 0
    %514 = vmatpush1.bf16.msra.mxu0 0
    %515 = vmatprep.subr.bf16.mxu0 0
    %516 = vmatpush1.bf16.msra.mxu0 0
    %517 = vmatprep.subr.bf16.mxu0 0
    %518 = vmatpush1.bf16.msra.mxu0 0
    %519 = vmatprep.subr.bf16.mxu0 0
    %520 = vmatpush1.bf16.msra.mxu0 0
    %521 = vmatprep.mubr.bf16.mxu0 0
    %522 = vmatmul.mubr.bf16.gmra.mrb[0].mxu0 %v487
    %v523 = vpop.f32.mrb[0].mxu0
    %v524 = vadd.f32 0.0, %v523
    %v525 = vpop.f32.mrb[0].mxu0
    %v526 = vpop.f32.mrb[0].mxu0
    %v527 = vadd.f32 0.0, %v526
    %v528 = vpop.f32.mrb[0].mxu0
    %529 = vdwg.mxu0
    %vm530 = vcmp.ge.s32.totalorder %v249, 16
    %vm531 = vcmp.lt.s32.totalorder %v249, 32
    %vm532 = vmand %vm530, %vm531
    %v533 = vsel %vm532, %v524, %v391
    %v534 = vsel %vm532, %v527, %v394
    %535 = vrot.lane.b32.xlu0 %v247, 32
    %v536 = vpop.permute.xlu0 %535
    %537 = vrot.lane.b32.xlu0 %v250, 96
    %v538 = vpop.permute.xlu0 %537
    %539 = vrot.lane.b32.xlu0 %v251, 96
    %v540 = vpop.permute.xlu0 %539
    %541 = vrot.lane.b32.xlu0 %v252, 96
    %v542 = vpop.permute.xlu0 %541
    %543 = vrot.lane.b32.xlu0 %v253, 96
    %v544 = vpop.permute.xlu0 %543
    %v546 = vsel %vm257, %v536, 0
    %v549 = vsel %vm257, %v538, 0
    %v552 = vsel %vm257, %v540, 0
    %v555 = vsel %vm257, %v542, 0
    %v558 = vsel %vm257, %v544, 0
    %560 = vmatprep.subr.bf16.mxu0 0
    %561 = vmatpush1.bf16.xpose.msra.mxu0 %v549
    %562 = vmatprep.subr.bf16.mxu0 0
    %563 = vmatpush1.bf16.xpose.msra.mxu0 %v552
    %564 = vmatprep.subr.bf16.mxu0 0
    %565 = vmatpush1.bf16.xpose.msra.mxu0 %v555
    %566 = vmatprep.subr.bf16.mxu0 0
    %567 = vmatpush1.bf16.xpose.msra.mxu0 %v558
    %568 = vmatprep.subr.bf16.mxu0 0
    %569 = vmatpush1.bf16.xpose.msra.mxu0 0
    %570 = vmatprep.subr.bf16.mxu0 0
    %571 = vmatpush1.bf16.xpose.msra.mxu0 0
    %572 = vmatprep.subr.bf16.mxu0 0
    %573 = vmatpush1.bf16.xpose.msra.mxu0 0
    %574 = vmatprep.subr.bf16.mxu0 0
    %575 = vmatpush1.bf16.xpose.msra.mxu0 0
    %576 = vmatprep.subr.bf16.mxu0 0
    %577 = vmatpush1.bf16.xpose.msra.mxu0 0
    %578 = vmatprep.subr.bf16.mxu0 0
    %579 = vmatpush1.bf16.xpose.msra.mxu0 0
    %580 = vmatprep.subr.bf16.mxu0 0
    %581 = vmatpush1.bf16.xpose.msra.mxu0 0
    %582 = vmatprep.subr.bf16.mxu0 0
    %583 = vmatpush1.bf16.xpose.msra.mxu0 0
    %584 = vmatprep.subr.bf16.mxu0 0
    %585 = vmatpush1.bf16.xpose.msra.mxu0 0
    %586 = vmatprep.subr.bf16.mxu0 0
    %587 = vmatpush1.bf16.xpose.msra.mxu0 0
    %588 = vmatprep.subr.bf16.mxu0 0
    %589 = vmatpush1.bf16.xpose.msra.mxu0 0
    %590 = vmatprep.subr.bf16.mxu0 0
    %591 = vmatpush1.bf16.xpose.msra.mxu0 0
    %592 = vmatprep.mubr.bf16.mxu0 0
    %593 = vmatmul.mubr.bf16.gmra.mrb[0].mxu0 %v546
    %v594 = vpop.f32.mrb[0].mxu0
    %v595 = vadd.f32 0.0, %v594
    %v596 = vpop.f32.mrb[0].mxu0
    %v597 = vpop.f32.mrb[0].mxu0
    %v598 = vadd.f32 0.0, %v597
    %v599 = vpop.f32.mrb[0].mxu0
    %600 = vdwg.mxu0
    %v601 = vsel %vm123, %v595, -inf
    %602 = vmax.xlane.f32.xlu0 %v601
    %v603 = vpop.xlane.xlu0 %602
    %v604 = vsel %vm123, %v598, -inf
    %605 = vmax.xlane.f32.xlu0 %v604
    %v606 = vpop.xlane.xlu0 %605
    %v607 = vsub.f32 %v595, %v603
    %v608 = vsub.f32 %v598, %v606
    %v609 = vmul.f32 %v607, 1.442695
    %v610 = vpow.pop %v609
    %v611 = vmul.f32 %v608, 1.442695
    %v612 = vpow.pop %v611
    %v613 = vsel %vm123, %v610, 0.0
    %614 = vadd.xlane.f32.xlu0 %v613
    %v615 = vpop.xlane.xlu0 %614
    %v616 = vsel %vm123, %v612, 0.0
    %617 = vadd.xlane.f32.xlu0 %v616
    %v618 = vpop.xlane.xlu0 %617
    %v619 = vrcp.pop %v615
    %v620 = vrcp.pop %v618
    %v621 = vmul.f32 %v610, %v619
    %v622 = vmul.f32 %v612, %v620
    %v623 = vpack.c.bf16 %v622, %v621
    %v625 = vsel %vm123, %v623, 0
    %627 = vmatprep.subr.bf16.mxu0 0
    %628 = vmatpush1.bf16.msra.mxu0 %v342
    %629 = vmatprep.subr.bf16.mxu0 0
    %630 = vmatpush1.bf16.msra.mxu0 %v344
    %631 = vmatprep.subr.bf16.mxu0 0
    %632 = vmatpush1.bf16.msra.mxu0 %v346
    %633 = vmatprep.subr.bf16.mxu0 0
    %634 = vmatpush1.bf16.msra.mxu0 %v348
    %635 = vmatprep.subr.bf16.mxu0 0
    %636 = vmatpush1.bf16.msra.mxu0 0
    %637 = vmatprep.subr.bf16.mxu0 0
    %638 = vmatpush1.bf16.msra.mxu0 0
    %639 = vmatprep.subr.bf16.mxu0 0
    %640 = vmatpush1.bf16.msra.mxu0 0
    %641 = vmatprep.subr.bf16.mxu0 0
    %642 = vmatpush1.bf16.msra.mxu0 0
    %643 = vmatprep.subr.bf16.mxu0 0
    %644 = vmatpush1.bf16.msra.mxu0 0
    %645 = vmatprep.subr.bf16.mxu0 0
    %646 = vmatpush1.bf16.msra.mxu0 0
    %647 = vmatprep.subr.bf16.mxu0 0
    %648 = vmatpush1.bf16.msra.mxu0 0
    %649 = vmatprep.subr.bf16.mxu0 0
    %650 = vmatpush1.bf16.msra.mxu0 0
    %651 = vmatprep.subr.bf16.mxu0 0
    %652 = vmatpush1.bf16.msra.mxu0 0
    %653 = vmatprep.subr.bf16.mxu0 0
    %654 = vmatpush1.bf16.msra.mxu0 0
    %655 = vmatprep.subr.bf16.mxu0 0
    %656 = vmatpush1.bf16.msra.mxu0 0
    %657 = vmatprep.subr.bf16.mxu0 0
    %658 = vmatpush1.bf16.msra.mxu0 0
    %659 = vmatprep.mubr.bf16.mxu0 0
    %660 = vmatmul.mubr.bf16.gmra.mrb[0].mxu0 %v625
    %v661 = vpop.f32.mrb[0].mxu0
    %v662 = vadd.f32 0.0, %v661
    %v663 = vpop.f32.mrb[0].mxu0
    %v664 = vpop.f32.mrb[0].mxu0
    %v665 = vadd.f32 0.0, %v664
    %v666 = vpop.f32.mrb[0].mxu0
    %667 = vdwg.mxu0
    %vm668 = vcmp.ge.s32.totalorder %v249, 32
    %vm669 = vcmp.lt.s32.totalorder %v249, 48
    %vm670 = vmand %vm668, %vm669
    %v671 = vsel %vm670, %v662, %v533
    %v672 = vsel %vm670, %v665, %v534
    %673 = vrot.lane.b32.xlu0 %v247, 16
    %v674 = vpop.permute.xlu0 %673
    %675 = vrot.lane.b32.xlu0 %v250, 80
    %v676 = vpop.permute.xlu0 %675
    %677 = vrot.lane.b32.xlu0 %v251, 80
    %v678 = vpop.permute.xlu0 %677
    %679 = vrot.lane.b32.xlu0 %v252, 80
    %v680 = vpop.permute.xlu0 %679
    %681 = vrot.lane.b32.xlu0 %v253, 80
    %v682 = vpop.permute.xlu0 %681
    %v684 = vsel %vm257, %v674, 0
    %v687 = vsel %vm257, %v676, 0
    %v690 = vsel %vm257, %v678, 0
    %v693 = vsel %vm257, %v680, 0
    %v696 = vsel %vm257, %v682, 0
    %698 = vmatprep.subr.bf16.mxu0 0
    %699 = vmatpush1.bf16.xpose.msra.mxu0 %v687
    %700 = vmatprep.subr.bf16.mxu0 0
    %701 = vmatpush1.bf16.xpose.msra.mxu0 %v690
    %702 = vmatprep.subr.bf16.mxu0 0
    %703 = vmatpush1.bf16.xpose.msra.mxu0 %v693
    %704 = vmatprep.subr.bf16.mxu0 0
    %705 = vmatpush1.bf16.xpose.msra.mxu0 %v696
    %706 = vmatprep.subr.bf16.mxu0 0
    %707 = vmatpush1.bf16.xpose.msra.mxu0 0
    %708 = vmatprep.subr.bf16.mxu0 0
    %709 = vmatpush1.bf16.xpose.msra.mxu0 0
    %710 = vmatprep.subr.bf16.mxu0 0
    %711 = vmatpush1.bf16.xpose.msra.mxu0 0
    %712 = vmatprep.subr.bf16.mxu0 0
    %713 = vmatpush1.bf16.xpose.msra.mxu0 0
    %714 = vmatprep.subr.bf16.mxu0 0
    %715 = vmatpush1.bf16.xpose.msra.mxu0 0
    %716 = vmatprep.subr.bf16.mxu0 0
    %717 = vmatpush1.bf16.xpose.msra.mxu0 0
    %718 = vmatprep.subr.bf16.mxu0 0
    %719 = vmatpush1.bf16.xpose.msra.mxu0 0
    %720 = vmatprep.subr.bf16.mxu0 0
    %721 = vmatpush1.bf16.xpose.msra.mxu0 0
    %722 = vmatprep.subr.bf16.mxu0 0
    %723 = vmatpush1.bf16.xpose.msra.mxu0 0
    %724 = vmatprep.subr.bf16.mxu0 0
    %725 = vmatpush1.bf16.xpose.msra.mxu0 0
    %726 = vmatprep.subr.bf16.mxu0 0
    %727 = vmatpush1.bf16.xpose.msra.mxu0 0
    %728 = vmatprep.subr.bf16.mxu0 0
    %729 = vmatpush1.bf16.xpose.msra.mxu0 0
    %730 = vmatprep.mubr.bf16.mxu0 0
    %731 = vmatmul.mubr.bf16.gmra.mrb[0].mxu0 %v684
    %v732 = vpop.f32.mrb[0].mxu0
    %v733 = vadd.f32 0.0, %v732
    %v734 = vpop.f32.mrb[0].mxu0
    %v735 = vpop.f32.mrb[0].mxu0
    %v736 = vadd.f32 0.0, %v735
    %v737 = vpop.f32.mrb[0].mxu0
    %738 = vdwg.mxu0
    %v739 = vsel %vm123, %v733, -inf
    %740 = vmax.xlane.f32.xlu0 %v739
    %v741 = vpop.xlane.xlu0 %740
    %v742 = vsel %vm123, %v736, -inf
    %743 = vmax.xlane.f32.xlu0 %v742
    %v744 = vpop.xlane.xlu0 %743
    %v745 = vsub.f32 %v733, %v741
    %v746 = vsub.f32 %v736, %v744
    %v747 = vmul.f32 %v745, 1.442695
    %v748 = vpow.pop %v747
    %v749 = vmul.f32 %v746, 1.442695
    %v750 = vpow.pop %v749
    %v751 = vsel %vm123, %v748, 0.0
    %752 = vadd.xlane.f32.xlu0 %v751
    %v753 = vpop.xlane.xlu0 %752
    %v754 = vsel %vm123, %v750, 0.0
    %755 = vadd.xlane.f32.xlu0 %v754
    %v756 = vpop.xlane.xlu0 %755
    %v757 = vrcp.pop %v753
    %v758 = vrcp.pop %v756
    %v759 = vmul.f32 %v748, %v757
    %v760 = vmul.f32 %v750, %v758
    %v761 = vpack.c.bf16 %v760, %v759
    %v763 = vsel %vm123, %v761, 0
    %765 = vmatprep.subr.bf16.mxu0 0
    %766 = vmatpush1.bf16.msra.mxu0 %v342
    %767 = vmatprep.subr.bf16.mxu0 0
    %768 = vmatpush1.bf16.msra.mxu0 %v344
    %769 = vmatprep.subr.bf16.mxu0 0
    %770 = vmatpush1.bf16.msra.mxu0 %v346
    %771 = vmatprep.subr.bf16.mxu0 0
    %772 = vmatpush1.bf16.msra.mxu0 %v348
    %773 = vmatprep.subr.bf16.mxu0 0
    %774 = vmatpush1.bf16.msra.mxu0 0
    %775 = vmatprep.subr.bf16.mxu0 0
    %776 = vmatpush1.bf16.msra.mxu0 0
    %777 = vmatprep.subr.bf16.mxu0 0
    %778 = vmatpush1.bf16.msra.mxu0 0
    %779 = vmatprep.subr.bf16.mxu0 0
    %780 = vmatpush1.bf16.msra.mxu0 0
    %781 = vmatprep.subr.bf16.mxu0 0
    %782 = vmatpush1.bf16.msra.mxu0 0
    %783 = vmatprep.subr.bf16.mxu0 0
    %784 = vmatpush1.bf16.msra.mxu0 0
    %785 = vmatprep.subr.bf16.mxu0 0
    %786 = vmatpush1.bf16.msra.mxu0 0
    %787 = vmatprep.subr.bf16.mxu0 0
    %788 = vmatpush1.bf16.msra.mxu0 0
    %789 = vmatprep.subr.bf16.mxu0 0
    %790 = vmatpush1.bf16.msra.mxu0 0
    %791 = vmatprep.subr.bf16.mxu0 0
    %792 = vmatpush1.bf16.msra.mxu0 0
    %793 = vmatprep.subr.bf16.mxu0 0
    %794 = vmatpush1.bf16.msra.mxu0 0
    %795 = vmatprep.subr.bf16.mxu0 0
    %796 = vmatpush1.bf16.msra.mxu0 0
    %797 = vmatprep.mubr.bf16.mxu0 0
    %798 = vmatmul.mubr.bf16.gmra.mrb[0].mxu0 %v763
    %v799 = vpop.f32.mrb[0].mxu0
    %v800 = vadd.f32 0.0, %v799
    %v801 = vpop.f32.mrb[0].mxu0
    %v802 = vpop.f32.mrb[0].mxu0
    %v803 = vadd.f32 0.0, %v802
    %v804 = vpop.f32.mrb[0].mxu0
    %805 = vdwg.mxu0
    %vm806 = vcmp.ge.s32.totalorder %v249, 48
    %vm807 = vcmp.lt.s32.totalorder %v249, 64
    %vm808 = vmand %vm806, %vm807
    %v809 = vsel %vm808, %v800, %v671
    %v810 = vsel %vm808, %v803, %v672
    %v811 = vpack.c.bf16 %v218, %v215
    %v812 = vpack.c.bf16 %v226, %v223
    %v813 = vpack.c.bf16 %v234, %v231
    %v814 = vpack.c.bf16 %v242, %v239
    %v816 = vsel %vm257, %v811, 0
    %v819 = vsel %vm257, %v812, 0
    %v822 = vsel %vm257, %v813, 0
    %v825 = vsel %vm257, %v814, 0
    %827 = vmatprep.subr.bf16.mxu0 0
    %828 = vmatpush1.bf16.xpose.msra.mxu0 %v816
    %829 = vmatprep.subr.bf16.mxu0 0
    %830 = vmatpush1.bf16.xpose.msra.mxu0 %v819
    %831 = vmatprep.subr.bf16.mxu0 0
    %832 = vmatpush1.bf16.xpose.msra.mxu0 %v822
    %833 = vmatprep.subr.bf16.mxu0 0
    %834 = vmatpush1.bf16.xpose.msra.mxu0 %v825
    %835 = vmatprep.subr.bf16.mxu0 0
    %836 = vmatpush1.bf16.xpose.msra.mxu0 0
    %837 = vmatprep.subr.bf16.mxu0 0
    %838 = vmatpush1.bf16.xpose.msra.mxu0 0
    %839 = vmatprep.subr.bf16.mxu0 0
    %840 = vmatpush1.bf16.xpose.msra.mxu0 0
    %841 = vmatprep.subr.bf16.mxu0 0
    %842 = vmatpush1.bf16.xpose.msra.mxu0 0
    %843 = vmatprep.subr.bf16.mxu0 0
    %844 = vmatpush1.bf16.xpose.msra.mxu0 0
    %845 = vmatprep.subr.bf16.mxu0 0
    %846 = vmatpush1.bf16.xpose.msra.mxu0 0
    %847 = vmatprep.subr.bf16.mxu0 0
    %848 = vmatpush1.bf16.xpose.msra.mxu0 0
    %849 = vmatprep.subr.bf16.mxu0 0
    %850 = vmatpush1.bf16.xpose.msra.mxu0 0
    %851 = vmatprep.subr.bf16.mxu0 0
    %852 = vmatpush1.bf16.xpose.msra.mxu0 0
    %853 = vmatprep.subr.bf16.mxu0 0
    %854 = vmatpush1.bf16.xpose.msra.mxu0 0
    %855 = vmatprep.subr.bf16.mxu0 0
    %856 = vmatpush1.bf16.xpose.msra.mxu0 0
    %857 = vmatprep.subr.bf16.mxu0 0
    %858 = vmatpush1.bf16.xpose.msra.mxu0 0
    %859 = vmatprep.mubr.bf16.mxu0 0
    %860 = vmatmul.mubr.bf16.gmra.mrb[0].mxu0 %v259
    %v861 = vpop.f32.mrb[0].mxu0
    %v862 = vadd.f32 0.0, %v861
    %v863 = vpop.f32.mrb[0].mxu0
    %v864 = vpop.f32.mrb[0].mxu0
    %v865 = vadd.f32 0.0, %v864
    %v866 = vpop.f32.mrb[0].mxu0
    %867 = vdwg.mxu0
    %v868 = vsel %vm123, %v862, -inf
    %869 = vmax.xlane.f32.xlu0 %v868
    %v870 = vpop.xlane.xlu0 %869
    %v871 = vsel %vm123, %v865, -inf
    %872 = vmax.xlane.f32.xlu0 %v871
    %v873 = vpop.xlane.xlu0 %872
    %v874 = vsub.f32 %v862, %v870
    %v875 = vsub.f32 %v865, %v873
    %v876 = vmul.f32 %v874, 1.442695
    %v877 = vpow.pop %v876
    %v878 = vmul.f32 %v875, 1.442695
    %v879 = vpow.pop %v878
    %v880 = vsel %vm123, %v877, 0.0
    %881 = vadd.xlane.f32.xlu0 %v880
    %v882 = vpop.xlane.xlu0 %881
    %v883 = vsel %vm123, %v879, 0.0
    %884 = vadd.xlane.f32.xlu0 %v883
    %v885 = vpop.xlane.xlu0 %884
    %v886 = vrcp.pop %v882
    %v887 = vrcp.pop %v885
    %v888 = vmul.f32 %v877, %v886
    %v889 = vmul.f32 %v879, %v887
    %v890 = vpack.c.bf16 %v889, %v888
    %895 = vrot.lane.b32.xlu0 %v811, 64
    %v896 = vpop.permute.xlu0 %895
    %897 = vrot.lane.b32.xlu0 %v812, 64
    %v898 = vpop.permute.xlu0 %897
    %899 = vrot.lane.b32.xlu0 %v813, 64
    %v900 = vpop.permute.xlu0 %899
    %901 = vrot.lane.b32.xlu0 %v814, 64
    %v902 = vpop.permute.xlu0 %901
    %v908 = vsel %vm123, %v890, 0
    %910 = vmatprep.subr.bf16.mxu0 0
    %911 = vmatpush1.bf16.msra.mxu0 %v896
    %912 = vmatprep.subr.bf16.mxu0 0
    %913 = vmatpush1.bf16.msra.mxu0 %v898
    %914 = vmatprep.subr.bf16.mxu0 0
    %915 = vmatpush1.bf16.msra.mxu0 %v900
    %916 = vmatprep.subr.bf16.mxu0 0
    %917 = vmatpush1.bf16.msra.mxu0 %v902
    %918 = vmatprep.subr.bf16.mxu0 0
    %919 = vmatpush1.bf16.msra.mxu0 0
    %920 = vmatprep.subr.bf16.mxu0 0
    %921 = vmatpush1.bf16.msra.mxu0 0
    %922 = vmatprep.subr.bf16.mxu0 0
    %923 = vmatpush1.bf16.msra.mxu0 0
    %924 = vmatprep.subr.bf16.mxu0 0
    %925 = vmatpush1.bf16.msra.mxu0 0
    %926 = vmatprep.subr.bf16.mxu0 0
    %927 = vmatpush1.bf16.msra.mxu0 0
    %928 = vmatprep.subr.bf16.mxu0 0
    %929 = vmatpush1.bf16.msra.mxu0 0
    %930 = vmatprep.subr.bf16.mxu0 0
    %931 = vmatpush1.bf16.msra.mxu0 0
    %932 = vmatprep.subr.bf16.mxu0 0
    %933 = vmatpush1.bf16.msra.mxu0 0
    %934 = vmatprep.subr.bf16.mxu0 0
    %935 = vmatpush1.bf16.msra.mxu0 0
    %936 = vmatprep.subr.bf16.mxu0 0
    %937 = vmatpush1.bf16.msra.mxu0 0
    %938 = vmatprep.subr.bf16.mxu0 0
    %939 = vmatpush1.bf16.msra.mxu0 0
    %940 = vmatprep.subr.bf16.mxu0 0
    %941 = vmatpush1.bf16.msra.mxu0 0
    %942 = vmatprep.mubr.bf16.mxu0 0
    %943 = vmatmul.mubr.bf16.gmra.mrb[0].mxu0 %v908
    %v944 = vpop.f32.mrb[0].mxu0
    %v945 = vadd.f32 0.0, %v944
    %v946 = vpop.f32.mrb[0].mxu0
    %v947 = vpop.f32.mrb[0].mxu0
    %v948 = vadd.f32 0.0, %v947
    %v949 = vpop.f32.mrb[0].mxu0
    %950 = vdwg.mxu0
    %951 = vrot.lane.b32.xlu0 %v811, 112
    %v952 = vpop.permute.xlu0 %951
    %953 = vrot.lane.b32.xlu0 %v812, 112
    %v954 = vpop.permute.xlu0 %953
    %955 = vrot.lane.b32.xlu0 %v813, 112
    %v956 = vpop.permute.xlu0 %955
    %957 = vrot.lane.b32.xlu0 %v814, 112
    %v958 = vpop.permute.xlu0 %957
    %v960 = vsel %vm257, %v952, 0
    %v963 = vsel %vm257, %v954, 0
    %v966 = vsel %vm257, %v956, 0
    %v969 = vsel %vm257, %v958, 0
    %971 = vmatprep.subr.bf16.mxu0 0
    %972 = vmatpush1.bf16.xpose.msra.mxu0 %v960
    %973 = vmatprep.subr.bf16.mxu0 0
    %974 = vmatpush1.bf16.xpose.msra.mxu0 %v963
    %975 = vmatprep.subr.bf16.mxu0 0
    %976 = vmatpush1.bf16.xpose.msra.mxu0 %v966
    %977 = vmatprep.subr.bf16.mxu0 0
    %978 = vmatpush1.bf16.xpose.msra.mxu0 %v969
    %979 = vmatprep.subr.bf16.mxu0 0
    %980 = vmatpush1.bf16.xpose.msra.mxu0 0
    %981 = vmatprep.subr.bf16.mxu0 0
    %982 = vmatpush1.bf16.xpose.msra.mxu0 0
    %983 = vmatprep.subr.bf16.mxu0 0
    %984 = vmatpush1.bf16.xpose.msra.mxu0 0
    %985 = vmatprep.subr.bf16.mxu0 0
    %986 = vmatpush1.bf16.xpose.msra.mxu0 0
    %987 = vmatprep.subr.bf16.mxu0 0
    %988 = vmatpush1.bf16.xpose.msra.mxu0 0
    %989 = vmatprep.subr.bf16.mxu0 0
    %990 = vmatpush1.bf16.xpose.msra.mxu0 0
    %991 = vmatprep.subr.bf16.mxu0 0
    %992 = vmatpush1.bf16.xpose.msra.mxu0 0
    %993 = vmatprep.subr.bf16.mxu0 0
    %994 = vmatpush1.bf16.xpose.msra.mxu0 0
    %995 = vmatprep.subr.bf16.mxu0 0
    %996 = vmatpush1.bf16.xpose.msra.mxu0 0
    %997 = vmatprep.subr.bf16.mxu0 0
    %998 = vmatpush1.bf16.xpose.msra.mxu0 0
    %999 = vmatprep.subr.bf16.mxu0 0
    %1000 = vmatpush1.bf16.xpose.msra.mxu0 0
    %1001 = vmatprep.subr.bf16.mxu0 0
    %1002 = vmatpush1.bf16.xpose.msra.mxu0 0
    %1003 = vmatprep.mubr.bf16.mxu0 0
    %1004 = vmatmul.mubr.bf16.gmra.mrb[0].mxu0 %v408
    %v1005 = vpop.f32.mrb[0].mxu0
    %v1006 = vadd.f32 0.0, %v1005
    %v1007 = vpop.f32.mrb[0].mxu0
    %v1008 = vpop.f32.mrb[0].mxu0
    %v1009 = vadd.f32 0.0, %v1008
    %v1010 = vpop.f32.mrb[0].mxu0
    %1011 = vdwg.mxu0
    %v1012 = vsel %vm123, %v1006, -inf
    %1013 = vmax.xlane.f32.xlu0 %v1012
    %v1014 = vpop.xlane.xlu0 %1013
    %v1015 = vsel %vm123, %v1009, -inf
    %1016 = vmax.xlane.f32.xlu0 %v1015
    %v1017 = vpop.xlane.xlu0 %1016
    %v1018 = vsub.f32 %v1006, %v1014
    %v1019 = vsub.f32 %v1009, %v1017
    %v1020 = vmul.f32 %v1018, 1.442695
    %v1021 = vpow.pop %v1020
    %v1022 = vmul.f32 %v1019, 1.442695
    %v1023 = vpow.pop %v1022
    %v1024 = vsel %vm123, %v1021, 0.0
    %1025 = vadd.xlane.f32.xlu0 %v1024
    %v1026 = vpop.xlane.xlu0 %1025
    %v1027 = vsel %vm123, %v1023, 0.0
    %1028 = vadd.xlane.f32.xlu0 %v1027
    %v1029 = vpop.xlane.xlu0 %1028
    %v1030 = vrcp.pop %v1026
    %v1031 = vrcp.pop %v1029
    %v1032 = vmul.f32 %v1021, %v1030
    %v1033 = vmul.f32 %v1023, %v1031
    %v1034 = vpack.c.bf16 %v1033, %v1032
    %v1036 = vsel %vm123, %v1034, 0
    %1038 = vmatprep.subr.bf16.mxu0 0
    %1039 = vmatpush1.bf16.msra.mxu0 %v896
    %1040 = vmatprep.subr.bf16.mxu0 0
    %1041 = vmatpush1.bf16.msra.mxu0 %v898
    %1042 = vmatprep.subr.bf16.mxu0 0
    %1043 = vmatpush1.bf16.msra.mxu0 %v900
    %1044 = vmatprep.subr.bf16.mxu0 0
    %1045 = vmatpush1.bf16.msra.mxu0 %v902
    %1046 = vmatprep.subr.bf16.mxu0 0
    %1047 = vmatpush1.bf16.msra.mxu0 0
    %1048 = vmatprep.subr.bf16.mxu0 0
    %1049 = vmatpush1.bf16.msra.mxu0 0
    %1050 = vmatprep.subr.bf16.mxu0 0
    %1051 = vmatpush1.bf16.msra.mxu0 0
    %1052 = vmatprep.subr.bf16.mxu0 0
    %1053 = vmatpush1.bf16.msra.mxu0 0
    %1054 = vmatprep.subr.bf16.mxu0 0
    %1055 = vmatpush1.bf16.msra.mxu0 0
    %1056 = vmatprep.subr.bf16.mxu0 0
    %1057 = vmatpush1.bf16.msra.mxu0 0
    %1058 = vmatprep.subr.bf16.mxu0 0
    %1059 = vmatpush1.bf16.msra.mxu0 0
    %1060 = vmatprep.subr.bf16.mxu0 0
    %1061 = vmatpush1.bf16.msra.mxu0 0
    %1062 = vmatprep.subr.bf16.mxu0 0
    %1063 = vmatpush1.bf16.msra.mxu0 0
    %1064 = vmatprep.subr.bf16.mxu0 0
    %1065 = vmatpush1.bf16.msra.mxu0 0
    %1066 = vmatprep.subr.bf16.mxu0 0
    %1067 = vmatpush1.bf16.msra.mxu0 0
    %1068 = vmatprep.subr.bf16.mxu0 0
    %1069 = vmatpush1.bf16.msra.mxu0 0
    %1070 = vmatprep.mubr.bf16.mxu0 0
    %1071 = vmatmul.mubr.bf16.gmra.mrb[0].mxu0 %v1036
    %v1072 = vpop.f32.mrb[0].mxu0
    %v1073 = vadd.f32 0.0, %v1072
    %v1074 = vpop.f32.mrb[0].mxu0
    %v1075 = vpop.f32.mrb[0].mxu0
    %v1076 = vadd.f32 0.0, %v1075
    %v1077 = vpop.f32.mrb[0].mxu0
    %1078 = vdwg.mxu0
    %v1079 = vsel %vm532, %v1073, %v945
    %v1080 = vsel %vm532, %v1076, %v948
    %1081 = vrot.lane.b32.xlu0 %v811, 96
    %v1082 = vpop.permute.xlu0 %1081
    %1083 = vrot.lane.b32.xlu0 %v812, 96
    %v1084 = vpop.permute.xlu0 %1083
    %1085 = vrot.lane.b32.xlu0 %v813, 96
    %v1086 = vpop.permute.xlu0 %1085
    %1087 = vrot.lane.b32.xlu0 %v814, 96
    %v1088 = vpop.permute.xlu0 %1087
    %v1090 = vsel %vm257, %v1082, 0
    %v1093 = vsel %vm257, %v1084, 0
    %v1096 = vsel %vm257, %v1086, 0
    %v1099 = vsel %vm257, %v1088, 0
    %1101 = vmatprep.subr.bf16.mxu0 0
    %1102 = vmatpush1.bf16.xpose.msra.mxu0 %v1090
    %1103 = vmatprep.subr.bf16.mxu0 0
    %1104 = vmatpush1.bf16.xpose.msra.mxu0 %v1093
    %1105 = vmatprep.subr.bf16.mxu0 0
    %1106 = vmatpush1.bf16.xpose.msra.mxu0 %v1096
    %1107 = vmatprep.subr.bf16.mxu0 0
    %1108 = vmatpush1.bf16.xpose.msra.mxu0 %v1099
    %1109 = vmatprep.subr.bf16.mxu0 0
    %1110 = vmatpush1.bf16.xpose.msra.mxu0 0
    %1111 = vmatprep.subr.bf16.mxu0 0
    %1112 = vmatpush1.bf16.xpose.msra.mxu0 0
    %1113 = vmatprep.subr.bf16.mxu0 0
    %1114 = vmatpush1.bf16.xpose.msra.mxu0 0
    %1115 = vmatprep.subr.bf16.mxu0 0
    %1116 = vmatpush1.bf16.xpose.msra.mxu0 0
    %1117 = vmatprep.subr.bf16.mxu0 0
    %1118 = vmatpush1.bf16.xpose.msra.mxu0 0
    %1119 = vmatprep.subr.bf16.mxu0 0
    %1120 = vmatpush1.bf16.xpose.msra.mxu0 0
    %1121 = vmatprep.subr.bf16.mxu0 0
    %1122 = vmatpush1.bf16.xpose.msra.mxu0 0
    %1123 = vmatprep.subr.bf16.mxu0 0
    %1124 = vmatpush1.bf16.xpose.msra.mxu0 0
    %1125 = vmatprep.subr.bf16.mxu0 0
    %1126 = vmatpush1.bf16.xpose.msra.mxu0 0
    %1127 = vmatprep.subr.bf16.mxu0 0
    %1128 = vmatpush1.bf16.xpose.msra.mxu0 0
    %1129 = vmatprep.subr.bf16.mxu0 0
    %1130 = vmatpush1.bf16.xpose.msra.mxu0 0
    %1131 = vmatprep.subr.bf16.mxu0 0
    %1132 = vmatpush1.bf16.xpose.msra.mxu0 0
    %1133 = vmatprep.mubr.bf16.mxu0 0
    %1134 = vmatmul.mubr.bf16.gmra.mrb[0].mxu0 %v546
    %v1135 = vpop.f32.mrb[0].mxu0
    %v1136 = vadd.f32 0.0, %v1135
    %v1137 = vpop.f32.mrb[0].mxu0
    %v1138 = vpop.f32.mrb[0].mxu0
    %v1139 = vadd.f32 0.0, %v1138
    %v1140 = vpop.f32.mrb[0].mxu0
    %1141 = vdwg.mxu0
    %v1142 = vsel %vm123, %v1136, -inf
    %1143 = vmax.xlane.f32.xlu0 %v1142
    %v1144 = vpop.xlane.xlu0 %1143
    %v1145 = vsel %vm123, %v1139, -inf
    %1146 = vmax.xlane.f32.xlu0 %v1145
    %v1147 = vpop.xlane.xlu0 %1146
    %v1148 = vsub.f32 %v1136, %v1144
    %v1149 = vsub.f32 %v1139, %v1147
    %v1150 = vmul.f32 %v1148, 1.442695
    %v1151 = vpow.pop %v1150
    %v1152 = vmul.f32 %v1149, 1.442695
    %v1153 = vpow.pop %v1152
    %v1154 = vsel %vm123, %v1151, 0.0
    %1155 = vadd.xlane.f32.xlu0 %v1154
    %v1156 = vpop.xlane.xlu0 %1155
    %v1157 = vsel %vm123, %v1153, 0.0
    %1158 = vadd.xlane.f32.xlu0 %v1157
    %v1159 = vpop.xlane.xlu0 %1158
    %v1160 = vrcp.pop %v1156
    %v1161 = vrcp.pop %v1159
    %v1162 = vmul.f32 %v1151, %v1160
    %v1163 = vmul.f32 %v1153, %v1161
    %v1164 = vpack.c.bf16 %v1163, %v1162
    %v1166 = vsel %vm123, %v1164, 0
    %1168 = vmatprep.subr.bf16.mxu0 0
    %1169 = vmatpush1.bf16.msra.mxu0 %v896
    %1170 = vmatprep.subr.bf16.mxu0 0
    %1171 = vmatpush1.bf16.msra.mxu0 %v898
    %1172 = vmatprep.subr.bf16.mxu0 0
    %1173 = vmatpush1.bf16.msra.mxu0 %v900
    %1174 = vmatprep.subr.bf16.mxu0 0
    %1175 = vmatpush1.bf16.msra.mxu0 %v902
    %1176 = vmatprep.subr.bf16.mxu0 0
    %1177 = vmatpush1.bf16.msra.mxu0 0
    %1178 = vmatprep.subr.bf16.mxu0 0
    %1179 = vmatpush1.bf16.msra.mxu0 0
    %1180 = vmatprep.subr.bf16.mxu0 0
    %1181 = vmatpush1.bf16.msra.mxu0 0
    %1182 = vmatprep.subr.bf16.mxu0 0
    %1183 = vmatpush1.bf16.msra.mxu0 0
    %1184 = vmatprep.subr.bf16.mxu0 0
    %1185 = vmatpush1.bf16.msra.mxu0 0
    %1186 = vmatprep.subr.bf16.mxu0 0
    %1187 = vmatpush1.bf16.msra.mxu0 0
    %1188 = vmatprep.subr.bf16.mxu0 0
    %1189 = vmatpush1.bf16.msra.mxu0 0
    %1190 = vmatprep.subr.bf16.mxu0 0
    %1191 = vmatpush1.bf16.msra.mxu0 0
    %1192 = vmatprep.subr.bf16.mxu0 0
    %1193 = vmatpush1.bf16.msra.mxu0 0
    %1194 = vmatprep.subr.bf16.mxu0 0
    %1195 = vmatpush1.bf16.msra.mxu0 0
    %1196 = vmatprep.subr.bf16.mxu0 0
    %1197 = vmatpush1.bf16.msra.mxu0 0
    %1198 = vmatprep.subr.bf16.mxu0 0
    %1199 = vmatpush1.bf16.msra.mxu0 0
    %1200 = vmatprep.mubr.bf16.mxu0 0
    %1201 = vmatmul.mubr.bf16.gmra.mrb[0].mxu0 %v1166
    %v1202 = vpop.f32.mrb[0].mxu0
    %v1203 = vadd.f32 0.0, %v1202
    %v1204 = vpop.f32.mrb[0].mxu0
    %v1205 = vpop.f32.mrb[0].mxu0
    %v1206 = vadd.f32 0.0, %v1205
    %v1207 = vpop.f32.mrb[0].mxu0
    %1208 = vdwg.mxu0
    %v1209 = vsel %vm670, %v1203, %v1079
    %v1210 = vsel %vm670, %v1206, %v1080
    %1211 = vrot.lane.b32.xlu0 %v811, 80
    %v1212 = vpop.permute.xlu0 %1211
    %1213 = vrot.lane.b32.xlu0 %v812, 80
    %v1214 = vpop.permute.xlu0 %1213
    %1215 = vrot.lane.b32.xlu0 %v813, 80
    %v1216 = vpop.permute.xlu0 %1215
    %1217 = vrot.lane.b32.xlu0 %v814, 80
    %v1218 = vpop.permute.xlu0 %1217
    %v1220 = vsel %vm257, %v1212, 0
    %v1223 = vsel %vm257, %v1214, 0
    %v1226 = vsel %vm257, %v1216, 0
    %v1229 = vsel %vm257, %v1218, 0
    %1231 = vmatprep.subr.bf16.mxu0 0
    %1232 = vmatpush1.bf16.xpose.msra.mxu0 %v1220
    %1233 = vmatprep.subr.bf16.mxu0 0
    %1234 = vmatpush1.bf16.xpose.msra.mxu0 %v1223
    %1235 = vmatprep.subr.bf16.mxu0 0
    %1236 = vmatpush1.bf16.xpose.msra.mxu0 %v1226
    %1237 = vmatprep.subr.bf16.mxu0 0
    %1238 = vmatpush1.bf16.xpose.msra.mxu0 %v1229
    %1239 = vmatprep.subr.bf16.mxu0 0
    %1240 = vmatpush1.bf16.xpose.msra.mxu0 0
    %1241 = vmatprep.subr.bf16.mxu0 0
    %1242 = vmatpush1.bf16.xpose.msra.mxu0 0
    %1243 = vmatprep.subr.bf16.mxu0 0
    %1244 = vmatpush1.bf16.xpose.msra.mxu0 0
    %1245 = vmatprep.subr.bf16.mxu0 0
    %1246 = vmatpush1.bf16.xpose.msra.mxu0 0
    %1247 = vmatprep.subr.bf16.mxu0 0
    %1248 = vmatpush1.bf16.xpose.msra.mxu0 0
    %1249 = vmatprep.subr.bf16.mxu0 0
    %1250 = vmatpush1.bf16.xpose.msra.mxu0 0
    %1251 = vmatprep.subr.bf16.mxu0 0
    %1252 = vmatpush1.bf16.xpose.msra.mxu0 0
    %1253 = vmatprep.subr.bf16.mxu0 0
    %1254 = vmatpush1.bf16.xpose.msra.mxu0 0
    %1255 = vmatprep.subr.bf16.mxu0 0
    %1256 = vmatpush1.bf16.xpose.msra.mxu0 0
    %1257 = vmatprep.subr.bf16.mxu0 0
    %1258 = vmatpush1.bf16.xpose.msra.mxu0 0
    %1259 = vmatprep.subr.bf16.mxu0 0
    %1260 = vmatpush1.bf16.xpose.msra.mxu0 0
    %1261 = vmatprep.subr.bf16.mxu0 0
    %1262 = vmatpush1.bf16.xpose.msra.mxu0 0
    %1263 = vmatprep.mubr.bf16.mxu0 0
    %1264 = vmatmul.mubr.bf16.gmra.mrb[0].mxu0 %v684
    %v1265 = vpop.f32.mrb[0].mxu0
    %v1266 = vadd.f32 0.0, %v1265
    %v1267 = vpop.f32.mrb[0].mxu0
    %v1268 = vpop.f32.mrb[0].mxu0
    %v1269 = vadd.f32 0.0, %v1268
    %v1270 = vpop.f32.mrb[0].mxu0
    %1271 = vdwg.mxu0
    %v1272 = vsel %vm123, %v1266, -inf
    %1273 = vmax.xlane.f32.xlu0 %v1272
    %v1274 = vpop.xlane.xlu0 %1273
    %v1275 = vsel %vm123, %v1269, -inf
    %1276 = vmax.xlane.f32.xlu0 %v1275
    %v1277 = vpop.xlane.xlu0 %1276
    %v1278 = vsub.f32 %v1266, %v1274
    %v1279 = vsub.f32 %v1269, %v1277
    %v1280 = vmul.f32 %v1278, 1.442695
    %v1281 = vpow.pop %v1280
    %v1282 = vmul.f32 %v1279, 1.442695
    %v1283 = vpow.pop %v1282
    %v1284 = vsel %vm123, %v1281, 0.0
    %1285 = vadd.xlane.f32.xlu0 %v1284
    %v1286 = vpop.xlane.xlu0 %1285
    %v1287 = vsel %vm123, %v1283, 0.0
    %1288 = vadd.xlane.f32.xlu0 %v1287
    %v1289 = vpop.xlane.xlu0 %1288
    %v1290 = vrcp.pop %v1286
    %v1291 = vrcp.pop %v1289
    %v1292 = vmul.f32 %v1281, %v1290
    %v1293 = vmul.f32 %v1283, %v1291
    %v1294 = vpack.c.bf16 %v1293, %v1292
    %v1296 = vsel %vm123, %v1294, 0
    %1298 = vmatprep.subr.bf16.mxu0 0
    %1299 = vmatpush1.bf16.msra.mxu0 %v896
    %1300 = vmatprep.subr.bf16.mxu0 0
    %1301 = vmatpush1.bf16.msra.mxu0 %v898
    %1302 = vmatprep.subr.bf16.mxu0 0
    %1303 = vmatpush1.bf16.msra.mxu0 %v900
    %1304 = vmatprep.subr.bf16.mxu0 0
    %1305 = vmatpush1.bf16.msra.mxu0 %v902
    %1306 = vmatprep.subr.bf16.mxu0 0
    %1307 = vmatpush1.bf16.msra.mxu0 0
    %1308 = vmatprep.subr.bf16.mxu0 0
    %1309 = vmatpush1.bf16.msra.mxu0 0
    %1310 = vmatprep.subr.bf16.mxu0 0
    %1311 = vmatpush1.bf16.msra.mxu0 0
    %1312 = vmatprep.subr.bf16.mxu0 0
    %1313 = vmatpush1.bf16.msra.mxu0 0
    %1314 = vmatprep.subr.bf16.mxu0 0
    %1315 = vmatpush1.bf16.msra.mxu0 0
    %1316 = vmatprep.subr.bf16.mxu0 0
    %1317 = vmatpush1.bf16.msra.mxu0 0
    %1318 = vmatprep.subr.bf16.mxu0 0
    %1319 = vmatpush1.bf16.msra.mxu0 0
    %1320 = vmatprep.subr.bf16.mxu0 0
    %1321 = vmatpush1.bf16.msra.mxu0 0
    %1322 = vmatprep.subr.bf16.mxu0 0
    %1323 = vmatpush1.bf16.msra.mxu0 0
    %1324 = vmatprep.subr.bf16.mxu0 0
    %1325 = vmatpush1.bf16.msra.mxu0 0
    %1326 = vmatprep.subr.bf16.mxu0 0
    %1327 = vmatpush1.bf16.msra.mxu0 0
    %1328 = vmatprep.subr.bf16.mxu0 0
    %1329 = vmatpush1.bf16.msra.mxu0 0
    %1330 = vmatprep.mubr.bf16.mxu0 0
    %1331 = vmatmul.mubr.bf16.gmra.mrb[0].mxu0 %v1296
    %v1332 = vpop.f32.mrb[0].mxu0
    %v1333 = vadd.f32 0.0, %v1332
    %v1334 = vpop.f32.mrb[0].mxu0
    %v1335 = vpop.f32.mrb[0].mxu0
    %v1336 = vadd.f32 0.0, %v1335
    %v1337 = vpop.f32.mrb[0].mxu0
    %1338 = vdwg.mxu0
    %v1339 = vsel %vm808, %v1333, %v1209
    %v1340 = vsel %vm808, %v1336, %v1210
    %v1341 = vpack.c.bf16 %v810, %v809
    %v1342 = vpack.c.bf16 %v1340, %v1339
    %v1343 = vld [vmem:[#allocation2 + $0x8] sm:$0xf]
    %v1344 = vld [vmem:[#allocation2 + $0x20] sm:$0xf]
    %v1345 = vld [vmem:[#allocation2 + $0x38] sm:$0xf]
    %v1346 = vld [vmem:[#allocation2 + $0x50] sm:$0xf]
    %v1347 = vld [vmem:[#allocation2 + $0x68] sm:$0xf]
    %v1348 = vld [vmem:[#allocation2 + $0x80] sm:$0xf]
    %v1349 = vld [vmem:[#allocation2 + $0x98] sm:$0xf]
    %v1350 = vld [vmem:[#allocation2 + $0xb0] sm:$0xf]
    %v1351 = vld [vmem:[%s1 + $0x11] sm:$0x1]
    %v1352 = vlaneseq
    %v1353 = vshrl.u32 %v1352, 7
    %v1354 = vsub.s32 0, %v1353
    %v1355 = vrot.slane %v1351, %v1354
    %v1364 = vunpack.c.l.b16 %v1343
    %v1365 = vunpack.c.l.b16 %v1344
    %v1366 = vunpack.c.l.b16 %v1345
    %v1367 = vunpack.c.l.b16 %v1346
    %v1368 = vunpack.c.l.b16 %v1347
    %v1369 = vunpack.c.l.b16 %v1348
    %v1370 = vunpack.c.l.b16 %v1349
    %v1371 = vunpack.c.l.b16 %v1350
    %v1372 = vpack.c.b16 %v1365, %v1364
    %v1373 = vpack.c.b16 %v1367, %v1366
    %v1374 = vpack.c.b16 %v1369, %v1368
    %v1375 = vpack.c.b16 %v1371, %v1370
    %v1381 = vsel %vm123, %v1341, 0
    %v1384 = vsel %vm123, %v1342, 0
    %1386 = vmatprep.subr.bf16.mxu0 0
    %1387 = vmatpush1.bf16.msra.mxu0 %v1372
    %1388 = vmatprep.subr.bf16.mxu0 0
    %1389 = vmatpush1.bf16.msra.mxu0 %v1373
    %1390 = vmatprep.subr.bf16.mxu0 0
    %1391 = vmatpush1.bf16.msra.mxu0 %v1374
    %1392 = vmatprep.subr.bf16.mxu0 0
    %1393 = vmatpush1.bf16.msra.mxu0 %v1375
    %1394 = vmatprep.subr.bf16.mxu0 0
    %1395 = vmatpush1.bf16.msra.mxu0 0
    %1396 = vmatprep.subr.bf16.mxu0 0
    %1397 = vmatpush1.bf16.msra.mxu0 0
    %1398 = vmatprep.subr.bf16.mxu0 0
    %1399 = vmatpush1.bf16.msra.mxu0 0
    %1400 = vmatprep.subr.bf16.mxu0 0
    %1401 = vmatpush1.bf16.msra.mxu0 0
    %1402 = vmatprep.subr.bf16.mxu0 0
    %1403 = vmatpush1.bf16.msra.mxu0 0
    %1404 = vmatprep.subr.bf16.mxu0 0
    %1405 = vmatpush1.bf16.msra.mxu0 0
    %1406 = vmatprep.subr.bf16.mxu0 0
    %1407 = vmatpush1.bf16.msra.mxu0 0
    %1408 = vmatprep.subr.bf16.mxu0 0
    %1409 = vmatpush1.bf16.msra.mxu0 0
    %1410 = vmatprep.subr.bf16.mxu0 0
    %1411 = vmatpush1.bf16.msra.mxu0 0
    %1412 = vmatprep.subr.bf16.mxu0 0
    %1413 = vmatpush1.bf16.msra.mxu0 0
    %1414 = vmatprep.subr.bf16.mxu0 0
    %1415 = vmatpush1.bf16.msra.mxu0 0
    %1416 = vmatprep.subr.bf16.mxu0 0
    %1417 = vmatpush1.bf16.msra.mxu0 0
    %1418 = vmatprep.mubr.bf16.mxu0 0
    %1419 = vmatmul.mubr.bf16.gmra.mrb[0].mxu0 %v1381
    %v1420 = vpop.f32.mrb[0].mxu0
    %v1421 = vadd.f32 %v1355, %v1420
    %v1422 = vpop.f32.mrb[0].mxu0
    %v1423 = vpop.f32.mrb[0].mxu0
    %v1424 = vadd.f32 %v1355, %v1423
    %v1425 = vpop.f32.mrb[0].mxu0
    %1426 = vmatprep.mubr.bf16.mxu0 0
    %1427 = vmatmul.mubr.bf16.gmra.mrb[0].mxu0 %v1384
    %v1428 = vpop.f32.mrb[0].mxu0
    %v1429 = vadd.f32 %v1355, %v1428
    %v1430 = vpop.f32.mrb[0].mxu0
    %v1431 = vpop.f32.mrb[0].mxu0
    %v1432 = vadd.f32 %v1355, %v1431
    %v1433 = vpop.f32.mrb[0].mxu0
    %1434 = vdwg.mxu0
    %v1435 = vadd.f32 %v245, %v1421
    %v1436 = vadd.f32 %v246, %v1424
    %v1437 = vadd.f32 %v245, %v1429
    %v1438 = vadd.f32 %v246, %v1432
    %v1439 = vld [vmem:[%s1 + $0x12] sm:$0x1]
    %v1440 = vld [vmem:[%s1 + $0x13] sm:$0x1]
    %v1441 = vsel %vm123, %v1435, 0.0
    %1442 = vadd.xlane.f32.xlu0 %v1441
    %v1443 = vpop.xlane.xlu0 %1442
    %v1444 = vsel %vm123, %v1436, 0.0
    %1445 = vadd.xlane.f32.xlu0 %v1444
    %v1446 = vpop.xlane.xlu0 %1445
    %v1447 = vsel %vm123, %v1437, 0.0
    %1448 = vadd.xlane.f32.xlu0 %v1447
    %v1449 = vpop.xlane.xlu0 %1448
    %v1450 = vsel %vm123, %v1438, 0.0
    %1451 = vadd.xlane.f32.xlu0 %v1450
    %v1452 = vpop.xlane.xlu0 %1451
    %v1453 = vrcp.pop 64.0
    %v1454 = vmul.f32 %v1443, %v1453
    %v1455 = vmul.f32 %v1446, %v1453
    %v1456 = vmul.f32 %v1449, %v1453
    %v1457 = vmul.f32 %v1452, %v1453
    %v1458 = vsub.f32 %v1435, %v1454
    %v1459 = vsub.f32 %v1436, %v1455
    %v1460 = vsub.f32 %v1437, %v1456
    %v1461 = vsub.f32 %v1438, %v1457
    %v1462 = vmul.f32 %v1458, %v1458
    %v1463 = vmul.f32 %v1459, %v1459
    %v1464 = vmul.f32 %v1460, %v1460
    %v1465 = vmul.f32 %v1461, %v1461
    %v1466 = vsel %vm123, %v1462, 0.0
    %1467 = vadd.xlane.f32.xlu0 %v1466
    %v1468 = vpop.xlane.xlu0 %1467
    %v1469 = vsel %vm123, %v1463, 0.0
    %1470 = vadd.xlane.f32.xlu0 %v1469
    %v1471 = vpop.xlane.xlu0 %1470
    %v1472 = vsel %vm123, %v1464, 0.0
    %1473 = vadd.xlane.f32.xlu0 %v1472
    %v1474 = vpop.xlane.xlu0 %1473
    %v1475 = vsel %vm123, %v1465, 0.0
    %1476 = vadd.xlane.f32.xlu0 %v1475
    %v1477 = vpop.xlane.xlu0 %1476
    %v1478 = vmul.f32 %v1468, %v1453
    %v1479 = vmul.f32 %v1471, %v1453
    %v1480 = vmul.f32 %v1474, %v1453
    %v1481 = vmul.f32 %v1477, %v1453
    %v1482 = vadd.f32 %v1478, 1e-05
    %v1483 = vadd.f32 %v1479, 1e-05
    %v1484 = vadd.f32 %v1480, 1e-05
    %v1485 = vadd.f32 %v1481, 1e-05
    %v1486 = vrsqrt.pop %v1482
    %v1487 = vrsqrt.pop %v1483
    %v1488 = vrsqrt.pop %v1484
    %v1489 = vrsqrt.pop %v1485
    %v1490 = vmul.f32 %v1458, %v1486
    %v1491 = vmul.f32 %v1459, %v1487
    %v1492 = vmul.f32 %v1460, %v1488
    %v1493 = vmul.f32 %v1461, %v1489
    %v1494 = vlaneseq
    %v1495 = vshrl.u32 %v1494, 7
    %v1496 = vsub.s32 0, %v1495
    %v1497 = vrot.slane %v1439, %v1496
    %v1498 = vmul.f32 %v1490, %v1497
    %v1499 = vmul.f32 %v1491, %v1497
    %v1500 = vmul.f32 %v1492, %v1497
    %v1501 = vmul.f32 %v1493, %v1497
    %v1502 = vlaneseq
    %v1503 = vshrl.u32 %v1502, 7
    %v1504 = vsub.s32 0, %v1503
    %v1505 = vrot.slane %v1440, %v1504
    %v1506 = vadd.f32 %v1498, %v1505
    %v1507 = vadd.f32 %v1499, %v1505
    %v1508 = vadd.f32 %v1500, %v1505
    %v1509 = vadd.f32 %v1501, %v1505
    %v1510 = vpack.c.bf16 %v1507, %v1506
    %v1511 = vpack.c.bf16 %v1509, %v1508
    %v1512 = vld [vmem:[#allocation2 + $0x4] sm:$0xf]
    %v1513 = vld [vmem:[#allocation2 + $0x1c] sm:$0xf]
    %v1514 = vld [vmem:[#allocation2 + $0x34] sm:$0xf]
    %v1515 = vld [vmem:[#allocation2 + $0x4c] sm:$0xf]
    %v1516 = vld [vmem:[#allocation2 + $0x64] sm:$0xf]
    %v1517 = vld [vmem:[#allocation2 + $0x7c] sm:$0xf]
    %v1518 = vld [vmem:[#allocation2 + $0x94] sm:$0xf]
    %v1519 = vld [vmem:[#allocation2 + $0xac] sm:$0xf]
    %v1520 = vld [vmem:[%s1 + $0x14] sm:$0x1]
    %v1521 = vlaneseq
    %v1522 = vshrl.u32 %v1521, 7
    %v1523 = vsub.s32 0, %v1522
    %v1524 = vrot.slane %v1520, %v1523
    %v1533 = vunpack.c.l.b16 %v1512
    %v1534 = vunpack.c.l.b16 %v1513
    %v1535 = vunpack.c.l.b16 %v1514
    %v1536 = vunpack.c.l.b16 %v1515
    %v1537 = vunpack.c.l.b16 %v1516
    %v1538 = vunpack.c.l.b16 %v1517
    %v1539 = vunpack.c.l.b16 %v1518
    %v1540 = vunpack.c.l.b16 %v1519
    %v1541 = vpack.c.b16 %v1534, %v1533
    %v1542 = vpack.c.b16 %v1536, %v1535
    %v1543 = vpack.c.b16 %v1538, %v1537
    %v1544 = vpack.c.b16 %v1540, %v1539
    %v1550 = vsel %vm123, %v1510, 0
    %v1553 = vsel %vm123, %v1511, 0
    %1555 = vmatprep.subr.bf16.mxu0 0
    %1556 = vmatpush1.bf16.msra.mxu0 %v1541
    %1557 = vmatprep.subr.bf16.mxu0 0
    %1558 = vmatpush1.bf16.msra.mxu0 %v1542
    %1559 = vmatprep.subr.bf16.mxu0 0
    %1560 = vmatpush1.bf16.msra.mxu0 %v1543
    %1561 = vmatprep.subr.bf16.mxu0 0
    %1562 = vmatpush1.bf16.msra.mxu0 %v1544
    %1563 = vmatprep.subr.bf16.mxu0 0
    %1564 = vmatpush1.bf16.msra.mxu0 0
    %1565 = vmatprep.subr.bf16.mxu0 0
    %1566 = vmatpush1.bf16.msra.mxu0 0
    %1567 = vmatprep.subr.bf16.mxu0 0
    %1568 = vmatpush1.bf16.msra.mxu0 0
    %1569 = vmatprep.subr.bf16.mxu0 0
    %1570 = vmatpush1.bf16.msra.mxu0 0
    %1571 = vmatprep.subr.bf16.mxu0 0
    %1572 = vmatpush1.bf16.msra.mxu0 0
    %1573 = vmatprep.subr.bf16.mxu0 0
    %1574 = vmatpush1.bf16.msra.mxu0 0
    %1575 = vmatprep.subr.bf16.mxu0 0
    %1576 = vmatpush1.bf16.msra.mxu0 0
    %1577 = vmatprep.subr.bf16.mxu0 0
    %1578 = vmatpush1.bf16.msra.mxu0 0
    %1579 = vmatprep.subr.bf16.mxu0 0
    %1580 = vmatpush1.bf16.msra.mxu0 0
    %1581 = vmatprep.subr.bf16.mxu0 0
    %1582 = vmatpush1.bf16.msra.mxu0 0
    %1583 = vmatprep.subr.bf16.mxu0 0
    %1584 = vmatpush1.bf16.msra.mxu0 0
    %1585 = vmatprep.subr.bf16.mxu0 0
    %1586 = vmatpush1.bf16.msra.mxu0 0
    %1587 = vmatprep.mubr.bf16.mxu0 0
    %1588 = vmatmul.mubr.bf16.gmra.mrb[0].mxu0 %v1550
    %v1589 = vpop.f32.mrb[0].mxu0
    %v1590 = vadd.f32 %v1524, %v1589
    %v1591 = vpop.f32.mrb[0].mxu0
    %v1592 = vpop.f32.mrb[0].mxu0
    %v1593 = vadd.f32 %v1524, %v1592
    %v1594 = vpop.f32.mrb[0].mxu0
    %1595 = vmatprep.mubr.bf16.mxu0 0
    %1596 = vmatmul.mubr.bf16.gmra.mrb[0].mxu0 %v1553
    %v1597 = vpop.f32.mrb[0].mxu0
    %v1598 = vadd.f32 %v1524, %v1597
    %v1599 = vpop.f32.mrb[0].mxu0
    %v1600 = vpop.f32.mrb[0].mxu0
    %v1601 = vadd.f32 %v1524, %v1600
    %v1602 = vpop.f32.mrb[0].mxu0
    %1603 = vdwg.mxu0
    %v1604 = vmax.f32 %v1590, 0.0
    %v1605 = vmax.f32 %v1593, 0.0
    %v1606 = vmax.f32 %v1598, 0.0
    %v1607 = vmax.f32 %v1601, 0.0
    %v1608 = vpack.c.bf16 %v1605, %v1604
    %v1609 = vpack.c.bf16 %v1607, %v1606
    %v1610 = vld [vmem:[#allocation2 + $0x10] sm:$0xf]
    %v1611 = vld [vmem:[#allocation2 + $0x28] sm:$0xf]
    %v1612 = vld [vmem:[#allocation2 + $0x40] sm:$0xf]
    %v1613 = vld [vmem:[#allocation2 + $0x58] sm:$0xf]
    %v1614 = vld [vmem:[#allocation2 + $0x70] sm:$0xf]
    %v1615 = vld [vmem:[#allocation2 + $0x88] sm:$0xf]
    %v1616 = vld [vmem:[#allocation2 + $0xa0] sm:$0xf]
    %v1617 = vld [vmem:[#allocation2 + $0xb8] sm:$0xf]
    %1620 = vrot.lane.b32.xlu0 %v1608, 64
    %v1621 = vpop.permute.xlu0 %1620
    %1622 = vrot.lane.b32.xlu0 %v1609, 64
    %v1623 = vpop.permute.xlu0 %1622
    %v1632 = vunpack.c.l.b16 %v1610
    %v1633 = vunpack.c.l.b16 %v1611
    %v1634 = vunpack.c.l.b16 %v1612
    %v1635 = vunpack.c.l.b16 %v1613
    %v1636 = vunpack.c.l.b16 %v1614
    %v1637 = vunpack.c.l.b16 %v1615
    %v1638 = vunpack.c.l.b16 %v1616
    %v1639 = vunpack.c.l.b16 %v1617
    %v1640 = vpack.c.b16 %v1633, %v1632
    %v1641 = vpack.c.b16 %v1635, %v1634
    %v1642 = vpack.c.b16 %v1637, %v1636
    %v1643 = vpack.c.b16 %v1639, %v1638
    %1644 = vrot.lane.b32.xlu0 %v1640, 64
    %v1645 = vpop.permute.xlu0 %1644
    %1646 = vrot.lane.b32.xlu0 %v1641, 64
    %v1647 = vpop.permute.xlu0 %1646
    %1648 = vrot.lane.b32.xlu0 %v1642, 64
    %v1649 = vpop.permute.xlu0 %1648
    %1650 = vrot.lane.b32.xlu0 %v1643, 64
    %v1651 = vpop.permute.xlu0 %1650
    %v1657 = vsel %vm123, %v1621, 0
    %v1660 = vsel %vm123, %v1623, 0
    %1662 = vmatprep.subr.bf16.mxu0 0
    %1663 = vmatpush1.bf16.msra.mxu0 %v1645
    %1664 = vmatprep.subr.bf16.mxu0 0
    %1665 = vmatpush1.bf16.msra.mxu0 %v1647
    %1666 = vmatprep.subr.bf16.mxu0 0
    %1667 = vmatpush1.bf16.msra.mxu0 %v1649
    %1668 = vmatprep.subr.bf16.mxu0 0
    %1669 = vmatpush1.bf16.msra.mxu0 %v1651
    %1670 = vmatprep.subr.bf16.mxu0 0
    %1671 = vmatpush1.bf16.msra.mxu0 0
    %1672 = vmatprep.subr.bf16.mxu0 0
    %1673 = vmatpush1.bf16.msra.mxu0 0
    %1674 = vmatprep.subr.bf16.mxu0 0
    %1675 = vmatpush1.bf16.msra.mxu0 0
    %1676 = vmatprep.subr.bf16.mxu0 0
    %1677 = vmatpush1.bf16.msra.mxu0 0
    %1678 = vmatprep.subr.bf16.mxu0 0
    %1679 = vmatpush1.bf16.msra.mxu0 0
    %1680 = vmatprep.subr.bf16.mxu0 0
    %1681 = vmatpush1.bf16.msra.mxu0 0
    %1682 = vmatprep.subr.bf16.mxu0 0
    %1683 = vmatpush1.bf16.msra.mxu0 0
    %1684 = vmatprep.subr.bf16.mxu0 0
    %1685 = vmatpush1.bf16.msra.mxu0 0
    %1686 = vmatprep.subr.bf16.mxu0 0
    %1687 = vmatpush1.bf16.msra.mxu0 0
    %1688 = vmatprep.subr.bf16.mxu0 0
    %1689 = vmatpush1.bf16.msra.mxu0 0
    %1690 = vmatprep.subr.bf16.mxu0 0
    %1691 = vmatpush1.bf16.msra.mxu0 0
    %1692 = vmatprep.subr.bf16.mxu0 0
    %1693 = vmatpush1.bf16.msra.mxu0 0
    %1694 = vmatprep.mubr.bf16.mxu0 0
    %1695 = vmatmul.mubr.bf16.gmra.mrb[0].mxu0 %v1657
    %v1696 = vpop.f32.mrb[0].mxu0
    %v1697 = vadd.f32 0.0, %v1696
    %v1698 = vpop.f32.mrb[0].mxu0
    %v1699 = vpop.f32.mrb[0].mxu0
    %v1700 = vadd.f32 0.0, %v1699
    %v1701 = vpop.f32.mrb[0].mxu0
    %1702 = vmatprep.mubr.bf16.mxu0 0
    %1703 = vmatmul.mubr.bf16.gmra.mrb[0].mxu0 %v1660
    %v1704 = vpop.f32.mrb[0].mxu0
    %v1705 = vadd.f32 0.0, %v1704
    %v1706 = vpop.f32.mrb[0].mxu0
    %v1707 = vpop.f32.mrb[0].mxu0
    %v1708 = vadd.f32 0.0, %v1707
    %v1709 = vpop.f32.mrb[0].mxu0
    %1710 = vdwg.mxu0
    %v1716 = vsel %vm123, %v1608, 0
    %v1719 = vsel %vm123, %v1609, 0
    %1721 = vmatprep.subr.bf16.mxu0 0
    %1722 = vmatpush1.bf16.msra.mxu0 %v1640
    %1723 = vmatprep.subr.bf16.mxu0 0
    %1724 = vmatpush1.bf16.msra.mxu0 %v1641
    %1725 = vmatprep.subr.bf16.mxu0 0
    %1726 = vmatpush1.bf16.msra.mxu0 %v1642
    %1727 = vmatprep.subr.bf16.mxu0 0
    %1728 = vmatpush1.bf16.msra.mxu0 %v1643
    %1729 = vmatprep.subr.bf16.mxu0 0
    %1730 = vmatpush1.bf16.msra.mxu0 0
    %1731 = vmatprep.subr.bf16.mxu0 0
    %1732 = vmatpush1.bf16.msra.mxu0 0
    %1733 = vmatprep.subr.bf16.mxu0 0
    %1734 = vmatpush1.bf16.msra.mxu0 0
    %1735 = vmatprep.subr.bf16.mxu0 0
    %1736 = vmatpush1.bf16.msra.mxu0 0
    %1737 = vmatprep.subr.bf16.mxu0 0
    %1738 = vmatpush1.bf16.msra.mxu0 0
    %1739 = vmatprep.subr.bf16.mxu0 0
    %1740 = vmatpush1.bf16.msra.mxu0 0
    %1741 = vmatprep.subr.bf16.mxu0 0
    %1742 = vmatpush1.bf16.msra.mxu0 0
    %1743 = vmatprep.subr.bf16.mxu0 0
    %1744 = vmatpush1.bf16.msra.mxu0 0
    %1745 = vmatprep.subr.bf16.mxu0 0
    %1746 = vmatpush1.bf16.msra.mxu0 0
    %1747 = vmatprep.subr.bf16.mxu0 0
    %1748 = vmatpush1.bf16.msra.mxu0 0
    %1749 = vmatprep.subr.bf16.mxu0 0
    %1750 = vmatpush1.bf16.msra.mxu0 0
    %1751 = vmatprep.subr.bf16.mxu0 0
    %1752 = vmatpush1.bf16.msra.mxu0 0
    %1753 = vmatprep.mubr.bf16.mxu0 0
    %1754 = vmatmul.mubr.bf16.gmra.mrb[0].mxu0 %v1716
    %v1755 = vpop.f32.mrb[0].mxu0
    %v1756 = vadd.f32 %v1697, %v1755
    %v1757 = vpop.f32.mrb[0].mxu0
    %v1758 = vpop.f32.mrb[0].mxu0
    %v1759 = vadd.f32 %v1700, %v1758
    %v1760 = vpop.f32.mrb[0].mxu0
    %1761 = vmatprep.mubr.bf16.mxu0 0
    %1762 = vmatmul.mubr.bf16.gmra.mrb[0].mxu0 %v1719
    %v1763 = vpop.f32.mrb[0].mxu0
    %v1764 = vadd.f32 %v1705, %v1763
    %v1765 = vpop.f32.mrb[0].mxu0
    %v1766 = vpop.f32.mrb[0].mxu0
    %v1767 = vadd.f32 %v1708, %v1766
    %v1768 = vpop.f32.mrb[0].mxu0
    %1769 = vdwg.mxu0
    %v1770 = vld [vmem:[%s1 + $0x15] sm:$0x1]
    %v1771 = vlaneseq
    %v1772 = vshrl.u32 %v1771, 7
    %v1773 = vsub.s32 0, %v1772
    %v1774 = vrot.slane %v1770, %v1773
    %v1775 = vadd.f32 %v1756, %v1774
    %v1776 = vadd.f32 %v1759, %v1774
    %v1777 = vadd.f32 %v1764, %v1774
    %v1778 = vadd.f32 %v1767, %v1774
    %v1779 = vadd.f32 %v1506, %v1775
    %v1780 = vadd.f32 %v1507, %v1776
    %v1781 = vadd.f32 %v1508, %v1777
    %v1782 = vadd.f32 %v1509, %v1778
    %v1783 = vld [vmem:[%s1 + $0x16] sm:$0x1]
    %v1784 = vld [vmem:[%s1 + $0x17] sm:$0x1]
    %v1785 = vsel %vm123, %v1779, 0.0
    %1786 = vadd.xlane.f32.xlu0 %v1785
    %v1787 = vpop.xlane.xlu0 %1786
    %v1788 = vsel %vm123, %v1780, 0.0
    %1789 = vadd.xlane.f32.xlu0 %v1788
    %v1790 = vpop.xlane.xlu0 %1789
    %v1791 = vsel %vm123, %v1781, 0.0
    %1792 = vadd.xlane.f32.xlu0 %v1791
    %v1793 = vpop.xlane.xlu0 %1792
    %v1794 = vsel %vm123, %v1782, 0.0
    %1795 = vadd.xlane.f32.xlu0 %v1794
    %v1796 = vpop.xlane.xlu0 %1795
    %v1797 = vmul.f32 %v1787, %v1453
    %v1798 = vmul.f32 %v1790, %v1453
    %v1799 = vmul.f32 %v1793, %v1453
    %v1800 = vmul.f32 %v1796, %v1453
    %v1801 = vsub.f32 %v1779, %v1797
    %v1802 = vsub.f32 %v1780, %v1798
    %v1803 = vsub.f32 %v1781, %v1799
    %v1804 = vsub.f32 %v1782, %v1800
    %v1805 = vmul.f32 %v1801, %v1801
    %v1806 = vmul.f32 %v1802, %v1802
    %v1807 = vmul.f32 %v1803, %v1803
    %v1808 = vmul.f32 %v1804, %v1804
    %v1809 = vsel %vm123, %v1805, 0.0
    %1810 = vadd.xlane.f32.xlu0 %v1809
    %v1811 = vpop.xlane.xlu0 %1810
    %v1812 = vsel %vm123, %v1806, 0.0
    %1813 = vadd.xlane.f32.xlu0 %v1812
    %v1814 = vpop.xlane.xlu0 %1813
    %v1815 = vsel %vm123, %v1807, 0.0
    %1816 = vadd.xlane.f32.xlu0 %v1815
    %v1817 = vpop.xlane.xlu0 %1816
    %v1818 = vsel %vm123, %v1808, 0.0
    %1819 = vadd.xlane.f32.xlu0 %v1818
    %v1820 = vpop.xlane.xlu0 %1819
    %v1821 = vmul.f32 %v1811, %v1453
    %v1822 = vmul.f32 %v1814, %v1453
    %v1823 = vmul.f32 %v1817, %v1453
    %v1824 = vmul.f32 %v1820, %v1453
    %v1825 = vadd.f32 %v1821, 1e-05
    %v1826 = vadd.f32 %v1822, 1e-05
    %v1827 = vadd.f32 %v1823, 1e-05
    %v1828 = vadd.f32 %v1824, 1e-05
    %v1829 = vrsqrt.pop %v1825
    %v1830 = vrsqrt.pop %v1826
    %v1831 = vrsqrt.pop %v1827
    %v1832 = vrsqrt.pop %v1828
    %v1833 = vmul.f32 %v1801, %v1829
    %v1834 = vmul.f32 %v1802, %v1830
    %v1835 = vmul.f32 %v1803, %v1831
    %v1836 = vmul.f32 %v1804, %v1832
    %v1837 = vlaneseq
    %v1838 = vshrl.u32 %v1837, 7
    %v1839 = vsub.s32 0, %v1838
    %v1840 = vrot.slane %v1783, %v1839
    %v1841 = vmul.f32 %v1833, %v1840
    %v1842 = vmul.f32 %v1834, %v1840
    %v1843 = vmul.f32 %v1835, %v1840
    %v1844 = vmul.f32 %v1836, %v1840
    %v1845 = vlaneseq
    %v1846 = vshrl.u32 %v1845, 7
    %v1847 = vsub.s32 0, %v1846
    %v1848 = vrot.slane %v1784, %v1847
    %v1849 = vadd.f32 %v1841, %v1848
    %v1850 = vadd.f32 %v1842, %v1848
    %v1851 = vadd.f32 %v1843, %v1848
    %v1852 = vadd.f32 %v1844, %v1848
    %v1853 = vpack.c.bf16 %v1850, %v1849
    %v1854 = vpack.c.bf16 %v1852, %v1851
    %v1855 = vld [vmem:[#allocation2 + $0xc] sm:$0xf]
    %v1856 = vld [vmem:[#allocation2 + $0x24] sm:$0xf]
    %v1857 = vld [vmem:[#allocation2 + $0x3c] sm:$0xf]
    %v1858 = vld [vmem:[#allocation2 + $0x54] sm:$0xf]
    %v1859 = vld [vmem:[#allocation2 + $0x6c] sm:$0xf]
    %v1860 = vld [vmem:[#allocation2 + $0x84] sm:$0xf]
    %v1861 = vld [vmem:[#allocation2 + $0x9c] sm:$0xf]
    %v1862 = vld [vmem:[#allocation2 + $0xb4] sm:$0xf]
    %v1863 = vld [vmem:[%s1 + $0x18] sm:$0x1]
    %v1864 = vlaneseq
    %v1865 = vshrl.u32 %v1864, 7
    %v1866 = vsub.s32 0, %v1865
    %v1867 = vrot.slane %v1863, %v1866
    %v1876 = vunpack.c.l.b16 %v1855
    %v1877 = vunpack.c.l.b16 %v1856
    %v1878 = vunpack.c.l.b16 %v1857
    %v1879 = vunpack.c.l.b16 %v1858
    %v1880 = vunpack.c.l.b16 %v1859
    %v1881 = vunpack.c.l.b16 %v1860
    %v1882 = vunpack.c.l.b16 %v1861
    %v1883 = vunpack.c.l.b16 %v1862
    %v1884 = vpack.c.b16 %v1877, %v1876
    %v1885 = vpack.c.b16 %v1879, %v1878
    %v1886 = vpack.c.b16 %v1881, %v1880
    %v1887 = vpack.c.b16 %v1883, %v1882
    %v1893 = vsel %vm123, %v1853, 0
    %v1896 = vsel %vm123, %v1854, 0
    %1898 = vmatprep.subr.bf16.mxu0 0
    %1899 = vmatpush1.bf16.msra.mxu0 %v1884
    %1900 = vmatprep.subr.bf16.mxu0 0
    %1901 = vmatpush1.bf16.msra.mxu0 %v1885
    %1902 = vmatprep.subr.bf16.mxu0 0
    %1903 = vmatpush1.bf16.msra.mxu0 %v1886
    %1904 = vmatprep.subr.bf16.mxu0 0
    %1905 = vmatpush1.bf16.msra.mxu0 %v1887
    %1906 = vmatprep.subr.bf16.mxu0 0
    %1907 = vmatpush1.bf16.msra.mxu0 0
    %1908 = vmatprep.subr.bf16.mxu0 0
    %1909 = vmatpush1.bf16.msra.mxu0 0
    %1910 = vmatprep.subr.bf16.mxu0 0
    %1911 = vmatpush1.bf16.msra.mxu0 0
    %1912 = vmatprep.subr.bf16.mxu0 0
    %1913 = vmatpush1.bf16.msra.mxu0 0
    %1914 = vmatprep.subr.bf16.mxu0 0
    %1915 = vmatpush1.bf16.msra.mxu0 0
    %1916 = vmatprep.subr.bf16.mxu0 0
    %1917 = vmatpush1.bf16.msra.mxu0 0
    %1918 = vmatprep.subr.bf16.mxu0 0
    %1919 = vmatpush1.bf16.msra.mxu0 0
    %1920 = vmatprep.subr.bf16.mxu0 0
    %1921 = vmatpush1.bf16.msra.mxu0 0
    %1922 = vmatprep.subr.bf16.mxu0 0
    %1923 = vmatpush1.bf16.msra.mxu0 0
    %1924 = vmatprep.subr.bf16.mxu0 0
    %1925 = vmatpush1.bf16.msra.mxu0 0
    %1926 = vmatprep.subr.bf16.mxu0 0
    %1927 = vmatpush1.bf16.msra.mxu0 0
    %1928 = vmatprep.subr.bf16.mxu0 0
    %1929 = vmatpush1.bf16.msra.mxu0 0
    %1930 = vmatprep.mubr.bf16.mxu0 0
    %1931 = vmatmul.mubr.bf16.gmra.mrb[0].mxu0 %v1893
    %v1932 = vpop.f32.mrb[0].mxu0
    %v1933 = vadd.f32 %v1867, %v1932
    %v1934 = vpop.f32.mrb[0].mxu0
    %v1935 = vpop.f32.mrb[0].mxu0
    %v1936 = vadd.f32 %v1867, %v1935
    %v1937 = vpop.f32.mrb[0].mxu0
    %1938 = vmatprep.mubr.bf16.mxu0 0
    %1939 = vmatmul.mubr.bf16.gmra.mrb[0].mxu0 %v1896
    %v1940 = vpop.f32.mrb[0].mxu0
    %v1941 = vadd.f32 %v1867, %v1940
    %v1942 = vpop.f32.mrb[0].mxu0
    %v1943 = vpop.f32.mrb[0].mxu0
    %v1944 = vadd.f32 %v1867, %v1943
    %v1945 = vpop.f32.mrb[0].mxu0
    %1946 = vdwg.mxu0
    %v1947 = vld [vmem:[%s1 + $0x19] sm:$0x1]
    %v1948 = vld [vmem:[%s1 + $0x1a] sm:$0x1]
    %1953 = vrot.lane.b32.xlu0 %v1933, 64
    %v1954 = vpop.permute.xlu0 %1953
    %1955 = vrot.lane.b32.xlu0 %v1936, 64
    %v1956 = vpop.permute.xlu0 %1955
    %1957 = vrot.lane.b32.xlu0 %v1941, 64
    %v1958 = vpop.permute.xlu0 %1957
    %1959 = vrot.lane.b32.xlu0 %v1944, 64
    %v1960 = vpop.permute.xlu0 %1959
    %v1965 = vsel %vm123, %v1954, 0.0
    %1966 = vadd.xlane.f32.xlu0 %v1965
    %v1967 = vpop.xlane.xlu0 %1966
    %v1968 = vsel %vm123, %v1956, 0.0
    %1969 = vadd.xlane.f32.xlu0 %v1968
    %v1970 = vpop.xlane.xlu0 %1969
    %v1971 = vsel %vm123, %v1958, 0.0
    %1972 = vadd.xlane.f32.xlu0 %v1971
    %v1973 = vpop.xlane.xlu0 %1972
    %v1974 = vsel %vm123, %v1960, 0.0
    %1975 = vadd.xlane.f32.xlu0 %v1974
    %v1976 = vpop.xlane.xlu0 %1975
    %v1977 = vmul.f32 %v1967, %v1453
    %v1978 = vmul.f32 %v1970, %v1453
    %v1979 = vmul.f32 %v1973, %v1453
    %v1980 = vmul.f32 %v1976, %v1453
    %v1981 = vsub.f32 %v1933, %v1977
    %v1982 = vsub.f32 %v1936, %v1978
    %v1983 = vsub.f32 %v1941, %v1979
    %v1984 = vsub.f32 %v1944, %v1980
    %v1985 = vmul.f32 %v1981, %v1981
    %v1986 = vmul.f32 %v1982, %v1982
    %v1987 = vmul.f32 %v1983, %v1983
    %v1988 = vmul.f32 %v1984, %v1984
    %1993 = vrot.lane.b32.xlu0 %v1985, 64
    %v1994 = vpop.permute.xlu0 %1993
    %1995 = vrot.lane.b32.xlu0 %v1986, 64
    %v1996 = vpop.permute.xlu0 %1995
    %1997 = vrot.lane.b32.xlu0 %v1987, 64
    %v1998 = vpop.permute.xlu0 %1997
    %1999 = vrot.lane.b32.xlu0 %v1988, 64
    %v2000 = vpop.permute.xlu0 %1999
    %v2005 = vsel %vm123, %v1994, 0.0
    %2006 = vadd.xlane.f32.xlu0 %v2005
    %v2007 = vpop.xlane.xlu0 %2006
    %v2008 = vsel %vm123, %v1996, 0.0
    %2009 = vadd.xlane.f32.xlu0 %v2008
    %v2010 = vpop.xlane.xlu0 %2009
    %v2011 = vsel %vm123, %v1998, 0.0
    %2012 = vadd.xlane.f32.xlu0 %v2011
    %v2013 = vpop.xlane.xlu0 %2012
    %v2014 = vsel %vm123, %v2000, 0.0
    %2015 = vadd.xlane.f32.xlu0 %v2014
    %v2016 = vpop.xlane.xlu0 %2015
    %v2017 = vmul.f32 %v2007, %v1453
    %v2018 = vmul.f32 %v2010, %v1453
    %v2019 = vmul.f32 %v2013, %v1453
    %v2020 = vmul.f32 %v2016, %v1453
    %v2021 = vadd.f32 %v2017, 1e-05
    %v2022 = vadd.f32 %v2018, 1e-05
    %v2023 = vadd.f32 %v2019, 1e-05
    %v2024 = vadd.f32 %v2020, 1e-05
    %v2025 = vrsqrt.pop %v2021
    %v2026 = vrsqrt.pop %v2022
    %v2027 = vrsqrt.pop %v2023
    %v2028 = vrsqrt.pop %v2024
    %v2029 = vmul.f32 %v1981, %v2025
    %v2030 = vmul.f32 %v1982, %v2026
    %v2031 = vmul.f32 %v1983, %v2027
    %v2032 = vmul.f32 %v1984, %v2028
    %v2033 = vlaneseq
    %v2034 = vshrl.u32 %v2033, 7
    %v2035 = vsub.s32 0, %v2034
    %v2036 = vrot.slane %v1947, %v2035
    %2038 = vrot.lane.b32.xlu0 %v2036, 64
    %v2039 = vpop.permute.xlu0 %2038
    %v2041 = vmul.f32 %v2029, %v2039
    %v2042 = vmul.f32 %v2030, %v2039
    %v2043 = vmul.f32 %v2031, %v2039
    %v2044 = vmul.f32 %v2032, %v2039
    %v2045 = vlaneseq
    %v2046 = vshrl.u32 %v2045, 7
    %v2047 = vsub.s32 0, %v2046
    %v2048 = vrot.slane %v1948, %v2047
    %2050 = vrot.lane.b32.xlu0 %v2048, 64
    %v2051 = vpop.permute.xlu0 %2050
    %v2053 = vadd.f32 %v2041, %v2051
    %v2054 = vadd.f32 %v2042, %v2051
    %v2055 = vadd.f32 %v2043, %v2051
    %v2056 = vadd.f32 %v2044, %v2051
    %v2057 = vmax.f32 %v2053, 0.0
    %v2058 = vmax.f32 %v2054, 0.0
    %v2059 = vmax.f32 %v2055, 0.0
    %v2060 = vmax.f32 %v2056, 0.0
    %v2061 = vpack.c.bf16 %v2058, %v2057
    %v2062 = vpack.c.bf16 %v2060, %v2059
    %v2063 = vld [vmem:[%s1 + $0x1b] sm:$0x1]
    %v2064 = vlaneseq
    %v2065 = vshrl.u32 %v2064, 7
    %v2066 = vsub.s32 0, %v2065
    %v2067 = vrot.slane %v2063, %v2066
    %2070 = vrot.lane.b32.xlu0 %v2061, 64
    %v2071 = vpop.permute.xlu0 %2070
    %2072 = vrot.lane.b32.xlu0 %v2062, 64
    %v2073 = vpop.permute.xlu0 %2072
    %2074 = vrot.lane.b32.xlu0 %v1372, 64
    %v2075 = vpop.permute.xlu0 %2074
    %2076 = vrot.lane.b32.xlu0 %v1373, 64
    %v2077 = vpop.permute.xlu0 %2076
    %2078 = vrot.lane.b32.xlu0 %v1374, 64
    %v2079 = vpop.permute.xlu0 %2078
    %2080 = vrot.lane.b32.xlu0 %v1375, 64
    %v2081 = vpop.permute.xlu0 %2080
    %v2087 = vsel %vm123, %v2071, 0
    %v2090 = vsel %vm123, %v2073, 0
    %2092 = vmatprep.subr.bf16.mxu0 0
    %2093 = vmatpush1.bf16.msra.mxu0 %v2075
    %2094 = vmatprep.subr.bf16.mxu0 0
    %2095 = vmatpush1.bf16.msra.mxu0 %v2077
    %2096 = vmatprep.subr.bf16.mxu0 0
    %2097 = vmatpush1.bf16.msra.mxu0 %v2079
    %2098 = vmatprep.subr.bf16.mxu0 0
    %2099 = vmatpush1.bf16.msra.mxu0 %v2081
    %2100 = vmatprep.subr.bf16.mxu0 0
    %2101 = vmatpush1.bf16.msra.mxu0 0
    %2102 = vmatprep.subr.bf16.mxu0 0
    %2103 = vmatpush1.bf16.msra.mxu0 0
    %2104 = vmatprep.subr.bf16.mxu0 0
    %2105 = vmatpush1.bf16.msra.mxu0 0
    %2106 = vmatprep.subr.bf16.mxu0 0
    %2107 = vmatpush1.bf16.msra.mxu0 0
    %2108 = vmatprep.subr.bf16.mxu0 0
    %2109 = vmatpush1.bf16.msra.mxu0 0
    %2110 = vmatprep.subr.bf16.mxu0 0
    %2111 = vmatpush1.bf16.msra.mxu0 0
    %2112 = vmatprep.subr.bf16.mxu0 0
    %2113 = vmatpush1.bf16.msra.mxu0 0
    %2114 = vmatprep.subr.bf16.mxu0 0
    %2115 = vmatpush1.bf16.msra.mxu0 0
    %2116 = vmatprep.subr.bf16.mxu0 0
    %2117 = vmatpush1.bf16.msra.mxu0 0
    %2118 = vmatprep.subr.bf16.mxu0 0
    %2119 = vmatpush1.bf16.msra.mxu0 0
    %2120 = vmatprep.subr.bf16.mxu0 0
    %2121 = vmatpush1.bf16.msra.mxu0 0
    %2122 = vmatprep.subr.bf16.mxu0 0
    %2123 = vmatpush1.bf16.msra.mxu0 0
    %2124 = vmatprep.mubr.bf16.mxu0 0
    %2125 = vmatmul.mubr.bf16.gmra.mrb[0].mxu0 %v2087
    %v2126 = vpop.f32.mrb[0].mxu0
    %v2127 = vadd.f32 %v2067, %v2126
    %v2128 = vpop.f32.mrb[0].mxu0
    %v2129 = vpop.f32.mrb[0].mxu0
    %v2130 = vadd.f32 %v2067, %v2129
    %v2131 = vpop.f32.mrb[0].mxu0
    %2132 = vmatprep.mubr.bf16.mxu0 0
    %2133 = vmatmul.mubr.bf16.gmra.mrb[0].mxu0 %v2090
    %v2134 = vpop.f32.mrb[0].mxu0
    %v2135 = vadd.f32 %v2067, %v2134
    %v2136 = vpop.f32.mrb[0].mxu0
    %v2137 = vpop.f32.mrb[0].mxu0
    %v2138 = vadd.f32 %v2067, %v2137
    %v2139 = vpop.f32.mrb[0].mxu0
    %2140 = vdwg.mxu0
    %v2141 = vld [vmem:[%s1 + $0x1c] sm:$0x1]
    %v2142 = vld [vmem:[%s1 + $0x1d] sm:$0x1]
    %v2143 = vsel %vm123, %v2127, 0.0
    %2144 = vadd.xlane.f32.xlu0 %v2143
    %v2145 = vpop.xlane.xlu0 %2144
    %v2146 = vsel %vm123, %v2130, 0.0
    %2147 = vadd.xlane.f32.xlu0 %v2146
    %v2148 = vpop.xlane.xlu0 %2147
    %v2149 = vsel %vm123, %v2135, 0.0
    %2150 = vadd.xlane.f32.xlu0 %v2149
    %v2151 = vpop.xlane.xlu0 %2150
    %v2152 = vsel %vm123, %v2138, 0.0
    %2153 = vadd.xlane.f32.xlu0 %v2152
    %v2154 = vpop.xlane.xlu0 %2153
    %v2155 = vmul.f32 %v2145, %v1453
    %v2156 = vmul.f32 %v2148, %v1453
    %v2157 = vmul.f32 %v2151, %v1453
    %v2158 = vmul.f32 %v2154, %v1453
    %v2159 = vsub.f32 %v2127, %v2155
    %v2160 = vsub.f32 %v2130, %v2156
    %v2161 = vsub.f32 %v2135, %v2157
    %v2162 = vsub.f32 %v2138, %v2158
    %v2163 = vmul.f32 %v2159, %v2159
    %v2164 = vmul.f32 %v2160, %v2160
    %v2165 = vmul.f32 %v2161, %v2161
    %v2166 = vmul.f32 %v2162, %v2162
    %v2167 = vsel %vm123, %v2163, 0.0
    %2168 = vadd.xlane.f32.xlu0 %v2167
    %v2169 = vpop.xlane.xlu0 %2168
    %v2170 = vsel %vm123, %v2164, 0.0
    %2171 = vadd.xlane.f32.xlu0 %v2170
    %v2172 = vpop.xlane.xlu0 %2171
    %v2173 = vsel %vm123, %v2165, 0.0
    %2174 = vadd.xlane.f32.xlu0 %v2173
    %v2175 = vpop.xlane.xlu0 %2174
    %v2176 = vsel %vm123, %v2166, 0.0
    %2177 = vadd.xlane.f32.xlu0 %v2176
    %v2178 = vpop.xlane.xlu0 %2177
    %v2179 = vmul.f32 %v2169, %v1453
    %v2180 = vmul.f32 %v2172, %v1453
    %v2181 = vmul.f32 %v2175, %v1453
    %v2182 = vmul.f32 %v2178, %v1453
    %v2183 = vadd.f32 %v2179, 1e-05
    %v2184 = vadd.f32 %v2180, 1e-05
    %v2185 = vadd.f32 %v2181, 1e-05
    %v2186 = vadd.f32 %v2182, 1e-05
    %v2187 = vrsqrt.pop %v2183
    %v2188 = vrsqrt.pop %v2184
    %v2189 = vrsqrt.pop %v2185
    %v2190 = vrsqrt.pop %v2186
    %v2191 = vmul.f32 %v2159, %v2187
    %v2192 = vmul.f32 %v2160, %v2188
    %v2193 = vmul.f32 %v2161, %v2189
    %v2194 = vmul.f32 %v2162, %v2190
    %v2195 = vlaneseq
    %v2196 = vshrl.u32 %v2195, 7
    %v2197 = vsub.s32 0, %v2196
    %v2198 = vrot.slane %v2141, %v2197
    %v2199 = vmul.f32 %v2191, %v2198
    %v2200 = vmul.f32 %v2192, %v2198
    %v2201 = vmul.f32 %v2193, %v2198
    %v2202 = vmul.f32 %v2194, %v2198
    %v2203 = vlaneseq
    %v2204 = vshrl.u32 %v2203, 7
    %v2205 = vsub.s32 0, %v2204
    %v2206 = vrot.slane %v2142, %v2205
    %v2207 = vadd.f32 %v2199, %v2206
    %v2208 = vadd.f32 %v2200, %v2206
    %v2209 = vadd.f32 %v2201, %v2206
    %v2210 = vadd.f32 %v2202, %v2206
    %v2211 = vmax.f32 %v2207, 0.0
    %v2212 = vmax.f32 %v2208, 0.0
    %v2213 = vmax.f32 %v2209, 0.0
    %v2214 = vmax.f32 %v2210, 0.0
    %v2215 = vpack.c.bf16 %v2212, %v2211
    %v2216 = vpack.c.bf16 %v2214, %v2213
    %v2217 = vld [vmem:[#allocation2 + $0x14] sm:$0xf]
    %v2218 = vld [vmem:[#allocation2 + $0x2c] sm:$0xf]
    %v2219 = vld [vmem:[#allocation2 + $0x44] sm:$0xf]
    %v2220 = vld [vmem:[#allocation2 + $0x5c] sm:$0xf]
    %v2221 = vld [vmem:[#allocation2 + $0x74] sm:$0xf]
    %v2222 = vld [vmem:[#allocation2 + $0x8c] sm:$0xf]
    %v2223 = vld [vmem:[#allocation2 + $0xa4] sm:$0xf]
    %v2224 = vld [vmem:[#allocation2 + $0xbc] sm:$0xf]
    %v2225 = vld [vmem:[%s1 + $0x1e] sm:$0x1]
    %v2226 = vlaneseq
    %v2227 = vshrl.u32 %v2226, 7
    %v2228 = vsub.s32 0, %v2227
    %v2229 = vrot.slane %v2225, %v2228
    %v2238 = vunpack.c.l.b16 %v2217
    %v2239 = vunpack.c.l.b16 %v2218
    %v2240 = vunpack.c.l.b16 %v2219
    %v2241 = vunpack.c.l.b16 %v2220
    %v2242 = vunpack.c.l.b16 %v2221
    %v2243 = vunpack.c.l.b16 %v2222
    %v2244 = vunpack.c.l.b16 %v2223
    %v2245 = vunpack.c.l.b16 %v2224
    %v2246 = vpack.c.b16 %v2239, %v2238
    %v2247 = vpack.c.b16 %v2241, %v2240
    %v2248 = vpack.c.b16 %v2243, %v2242
    %v2249 = vpack.c.b16 %v2245, %v2244
    %v2255 = vsel %vm123, %v2215, 0
    %v2258 = vsel %vm123, %v2216, 0
    %2260 = vmatprep.subr.bf16.mxu0 0
    %2261 = vmatpush1.bf16.msra.mxu0 %v2246
    %2262 = vmatprep.subr.bf16.mxu0 0
    %2263 = vmatpush1.bf16.msra.mxu0 %v2247
    %2264 = vmatprep.subr.bf16.mxu0 0
    %2265 = vmatpush1.bf16.msra.mxu0 %v2248
    %2266 = vmatprep.subr.bf16.mxu0 0
    %2267 = vmatpush1.bf16.msra.mxu0 %v2249
    %2268 = vmatprep.subr.bf16.mxu0 0
    %2269 = vmatpush1.bf16.msra.mxu0 0
    %2270 = vmatprep.subr.bf16.mxu0 0
    %2271 = vmatpush1.bf16.msra.mxu0 0
    %2272 = vmatprep.subr.bf16.mxu0 0
    %2273 = vmatpush1.bf16.msra.mxu0 0
    %2274 = vmatprep.subr.bf16.mxu0 0
    %2275 = vmatpush1.bf16.msra.mxu0 0
    %2276 = vmatprep.subr.bf16.mxu0 0
    %2277 = vmatpush1.bf16.msra.mxu0 0
    %2278 = vmatprep.subr.bf16.mxu0 0
    %2279 = vmatpush1.bf16.msra.mxu0 0
    %2280 = vmatprep.subr.bf16.mxu0 0
    %2281 = vmatpush1.bf16.msra.mxu0 0
    %2282 = vmatprep.subr.bf16.mxu0 0
    %2283 = vmatpush1.bf16.msra.mxu0 0
    %2284 = vmatprep.subr.bf16.mxu0 0
    %2285 = vmatpush1.bf16.msra.mxu0 0
    %2286 = vmatprep.subr.bf16.mxu0 0
    %2287 = vmatpush1.bf16.msra.mxu0 0
    %2288 = vmatprep.subr.bf16.mxu0 0
    %2289 = vmatpush1.bf16.msra.mxu0 0
    %2290 = vmatprep.subr.bf16.mxu0 0
    %2291 = vmatpush1.bf16.msra.mxu0 0
    %2292 = vmatprep.mubr.bf16.mxu0 0
    %2293 = vmatmul.mubr.bf16.gmra.mrb[0].mxu0 %v2255
    %v2294 = vpop.f32.mrb[0].mxu0
    %v2295 = vadd.f32 %v2229, %v2294
    %v2296 = vpop.f32.mrb[0].mxu0
    %v2297 = vpop.f32.mrb[0].mxu0
    %v2298 = vadd.f32 %v2229, %v2297
    %v2299 = vpop.f32.mrb[0].mxu0
    %2300 = vmatprep.mubr.bf16.mxu0 0
    %2301 = vmatmul.mubr.bf16.gmra.mrb[0].mxu0 %v2258
    %v2302 = vpop.f32.mrb[0].mxu0
    %v2303 = vadd.f32 %v2229, %v2302
    %v2304 = vpop.f32.mrb[0].mxu0
    %v2305 = vpop.f32.mrb[0].mxu0
    %v2306 = vadd.f32 %v2229, %v2305
    %v2307 = vpop.f32.mrb[0].mxu0
    %2308 = vdwg.mxu0
    %vm2309 = vcmp.ge.s32.totalorder %v249, 15
    %vm2310 = vcmp.lt.s32.totalorder %v249, 24
    %vm2311 = vmand %vm2309, %vm2310
    %v2312 = vsel %vm2311, %v1933, -inf
    %v2313 = vsel %vm2311, %v1936, -inf
    %v2314 = vsel %vm2311, %v1941, -inf
    %v2315 = vsel %vm2311, %v1944, -inf
    %2316 = vmax.xlane.f32.xlu0 %v2312
    %v2317 = vpop.xlane.xlu0 %2316
    %2318 = vmax.xlane.f32.xlu0 %v2313
    %v2319 = vpop.xlane.xlu0 %2318
    %2320 = vmax.xlane.f32.xlu0 %v2314
    %v2321 = vpop.xlane.xlu0 %2320
    %2322 = vmax.xlane.f32.xlu0 %v2315
    %v2323 = vpop.xlane.xlu0 %2322
    %v2324 = vsub.f32 %v2312, %v2317
    %v2325 = vsub.f32 %v2313, %v2319
    %v2326 = vsub.f32 %v2314, %v2321
    %v2327 = vsub.f32 %v2315, %v2323
    %v2328 = vmul.f32 %v2324, 1.442695
    %v2329 = vpow.pop %v2328
    %v2330 = vmul.f32 %v2325, 1.442695
    %v2331 = vpow.pop %v2330
    %v2332 = vmul.f32 %v2326, 1.442695
    %v2333 = vpow.pop %v2332
    %v2334 = vmul.f32 %v2327, 1.442695
    %v2335 = vpow.pop %v2334
    %2336 = vadd.xlane.f32.xlu0 %v2329
    %v2337 = vpop.xlane.xlu0 %2336
    %2338 = vadd.xlane.f32.xlu0 %v2331
    %v2339 = vpop.xlane.xlu0 %2338
    %2340 = vadd.xlane.f32.xlu0 %v2333
    %v2341 = vpop.xlane.xlu0 %2340
    %2342 = vadd.xlane.f32.xlu0 %v2335
    %v2343 = vpop.xlane.xlu0 %2342
    %v2344 = vrcp.pop %v2337
    %v2345 = vmul.f32 %v2329, %v2344
    %v2346 = vrcp.pop %v2339
    %v2347 = vmul.f32 %v2331, %v2346
    %v2348 = vrcp.pop %v2341
    %v2349 = vmul.f32 %v2333, %v2348
    %v2350 = vrcp.pop %v2343
    %v2351 = vmul.f32 %v2335, %v2350
    %vm2352 = vcmp.lt.s32.totalorder %v249, 15
    %v2353 = vsel %vm2352, %v1933, 0.0
    %v2354 = vsel %vm2352, %v1936, 0.0
    %v2355 = vsel %vm2352, %v1941, 0.0
    %v2356 = vsel %vm2352, %v1944, 0.0
    %v2357 = vadd.f32 %v2353, %v2295
    %v2358 = vadd.f32 %v2354, %v2298
    %v2359 = vadd.f32 %v2355, %v2303
    %v2360 = vadd.f32 %v2356, %v2306
    %v2361 = vadd.f32 %v2357, %v2345
    %v2362 = vadd.f32 %v2358, %v2347
    %v2363 = vadd.f32 %v2359, %v2349
    %v2364 = vadd.f32 %v2360, %v2351
    %2365 = vst [vmem:[#allocation5] sm:$0xff] %v2361
    %2366 = vst [vmem:[#allocation5 + $0x8] sm:$0xff] %v2362
    %2367 = vst [vmem:[#allocation5 + $0x10] sm:$0xff] %v2363
    %2368 = vst [vmem:[#allocation5 + $0x18] sm:$0xff] %v2364
    // Predicated region
    $region18: #{tpu_custom_call.1} parent=1 // pred_check
      _
    $region19: #{tpu_custom_call.1} parent=1 // pred_check_branch
      %2370 = sbr.rel (0) target = $region21
    $region20: #{tpu_custom_call.1} parent=1 // pred_region
      %s2372 = ssub.s32 512, 512
      %2373 = vsyncadd [#allocation4], %s2372
      %s2374 = sshll.u32 [#allocation5], 4
      %s2375 = int_to_ptr.vmem [resolvable:$true] %s2374
      %2380 = dma.vmem_to_hbm [thread:$0]  %s2375, 512, %s3, [#allocation4], 128, 128, 8
    $region21: #{tpu_custom_call.1} parent=1 // pred_fallthru
      _
    // Predicated region
    $region22: #{tpu_custom_call.1} parent=1 // pred_check
      _
    $region23: #{tpu_custom_call.1} parent=1 // pred_check_branch
      %2382 = sbr.rel (0) target = $region25
    $region24: #{tpu_custom_call.1} parent=1 // pred_region
      %2383 = dma.done [#allocation4], 512
    $region25: #{tpu_custom_call.1} parent=1 // pred_fallthru
      _
    %2384 = vsyncpa [#allocation3], 1
    %2385 = vsyncpa [#allocation4], 1

</llo_original>
